<compile_context>
chip_gen: v6e
topology: v6e:2x2x1
jax: 0.10.0
libtpu: 0.0.40
codegen_flags: <defaults>
</compile_context>

<pallas_src>
import functools
import math

import jax
import jax.numpy as jnp
from jax.experimental import pallas as pl
from jax.experimental.pallas import tpu as pltpu


LANE = 128


def _round_up(n, m):
    return ((n + m - 1) // m) * m


@functools.lru_cache(maxsize=1)
def _vmem_limit_bytes():
    """~80% of physical VMEM: raise the default 16/32 MiB scoped limit."""
    try:
        cap = pltpu.get_tpu_info().vmem_capacity_bytes
    except Exception:
        cap = 64 * 1024 * 1024  # conservative fallback (v7x physical per-core VMEM)
    return int(cap * 0.8)


# ----------------------------------------------------------------------------
# In-kernel helpers (operate on VMEM-resident values)
# ----------------------------------------------------------------------------

def _repeat_broadcast(en, out_len):
    """Broadcast encoding (C, Lp) to length out_len, matching PyTorch _conditon.

    Divisible case: consecutive repeat of each column (broadcast + reshape —
    no iota mask, no matmul).  Remainder case: tile the whole encoding and
    append a prefix (plain concats), exactly as the reference does.
    """
    c, lp = en.shape
    rep = out_len // lp
    rem = out_len % lp
    if rem == 0:
        if rep == 1:
            return en
        return jnp.broadcast_to(en[:, :, None], (c, lp, rep)).reshape(c, lp * rep)
    return jnp.concatenate([en] * rep + [en[:, :rem]], axis=1)


def _tap_conv(x, ws, b, dilation, out_len, pre=None):
    """Valid dilated conv via per-tap matmul accumulation (no tap concat).

    x: (Cin, Lin); ws: list of per-tap (Cout, Cin) weights; b: (Cout, 1).
    Returns (out, last_tap_slice): `out` is b + sum_k ws[k] @ pre(x[:, k*d:k*d+out_len]),
    `last_tap_slice` equals the raw x[:, -out_len:] and is reused by callers as
    the residual crop (saves one lane-unaligned relayout per layer).
    """
    acc = b
    last = None
    for k, w in enumerate(ws):
        sl = x[:, k * dilation:k * dilation + out_len]
        last = sl
        xin = pre(sl) if pre is not None else sl
        acc = acc + jnp.dot(w, xin, preferred_element_type=jnp.float32)
    return acc, last


# ----------------------------------------------------------------------------
# Fused Pallas kernels
# ----------------------------------------------------------------------------

def encoder_kernel(x_ref, wc_ref, bc_ref, wd_ref, bd_ref, w1_ref, b1_ref,
                   wb_ref, bb_ref, enc_ref, *, dilations, filter_width, pool,
                   lp, lp_pad):
    """Entire encoder for one batch element: causal conv -> residual stack ->
    1x1 bottleneck -> avg pool, all VMEM-resident."""
    fw = filter_width
    x = x_ref[0]                                              # (Q, L)
    lout = x.shape[-1] - (fw - 1)
    cur, _ = _tap_conv(x, [wc_ref[k] for k in range(fw)], bc_ref[...], 1, lout)

    relu = lambda v: jnp.maximum(v, 0.0)
    for i, d in enumerate(dilations):                         # unrolled layer loop
        lo = cur.shape[-1] - (fw - 1) * d
        # dilation conv on relu(cur); `last` is the raw (pre-relu) residual crop,
        # matching the reference (residual taps the pre-activation input).
        h, last = _tap_conv(cur, [wd_ref[i * fw + k] for k in range(fw)],
                            bd_ref[i], d, lo, pre=relu)
        h = relu(h)
        y = jnp.dot(w1_ref[i], h, preferred_element_type=jnp.float32) + b1_ref[i]
        cur = y + last

    # 1x1 bottleneck
    hb = jnp.dot(wb_ref[...], cur, preferred_element_type=jnp.float32) + bb_ref[...]
    # avg pool: window reshape + mean (linear in L; no O(L^2/pool) matrix)
    cb = hb.shape[0]
    pooled = jnp.mean(hb[:, :lp * pool].reshape(cb, lp, pool), axis=-1)
    if lp_pad > lp:                                           # lane-dense store
        pooled = jnp.concatenate(
            [pooled, jnp.zeros((cb, lp_pad - lp), jnp.float32)], axis=1)
    enc_ref[0] = pooled.astype(enc_ref.dtype)


def decoder_kernel(x_ref, enc_ref, wc_ref, bc_ref, wfg_ref, bfg_ref,
                   wcd_ref, bcd_ref, wdn_ref, bdn_ref, wsk_ref, bsk_ref,
                   w1_ref, b1_ref, wch_ref, bch_ref, w2_ref, b2_ref, out_ref,
                   *, dilations, filter_width, output_width, lp, out_pad):
    """Entire decoder for one batch element: causal conv -> gated/conditioned
    residual stack with running skip accumulator -> output head."""
    fw = filter_width
    x = x_ref[0]                                              # (Q, L)
    enc = enc_ref[0][:, :lp]                                  # valid cols of padded encoding
    lout = x.shape[-1] - (fw - 1)
    cur, _ = _tap_conv(x, [wc_ref[k] for k in range(fw)], bc_ref[...], 1, lout)

    n_skip = wsk_ref.shape[1]
    skip_acc = jnp.zeros((n_skip, output_width), jnp.float32)

    for i, d in enumerate(dilations):                         # unrolled layer loop
        lo = cur.shape[-1] - (fw - 1) * d
        s, last = _tap_conv(cur, [wfg_ref[i * fw + k] for k in range(fw)],
                            bfg_ref[i], d, lo)
        # 1x1 conditioning conv on the tiny pooled encoding + in-kernel broadcast
        en_i = jnp.dot(wcd_ref[i], enc, preferred_element_type=jnp.float32) + bcd_ref[i]
        s = s + _repeat_broadcast(en_i, lo)
        half = s.shape[0] // 2
        z = jnp.tanh(s[half:]) * jax.nn.sigmoid(s[:half])     # filter = 2nd half, gate = 1st half
        x_res = jnp.dot(wdn_ref[i], z, preferred_element_type=jnp.float32) + bdn_ref[i]
        cur = last + x_res                                    # residual crop == last tap slice
        # lo >= output_width for every layer (checked statically in the wrapper)
        z_skip = z[:, lo - output_width:]
        skip_acc = skip_acc + (jnp.dot(wsk_ref[i], z_skip,
                                       preferred_element_type=jnp.float32) + bsk_ref[i])

    res = jnp.maximum(skip_acc, 0.0)
    res = jnp.dot(w1_ref[...], res, preferred_element_type=jnp.float32) + b1_ref[...]
    en_h = jnp.dot(wch_ref[...], enc, preferred_element_type=jnp.float32) + bch_ref[...]
    res = res + _repeat_broadcast(en_h, output_width)
    res = jnp.maximum(res, 0.0)
    res = jnp.dot(w2_ref[...], res, preferred_element_type=jnp.float32) + b2_ref[...]
    q = res.shape[0]
    if out_pad > output_width:                                # lane-dense store
        res = jnp.concatenate(
            [res, jnp.zeros((q, out_pad - output_width), jnp.float32)], axis=1)
    out_ref[0] = res.astype(out_ref.dtype)


# ----------------------------------------------------------------------------
# pallas_call wrappers (glue: BlockSpecs / grid setup)
# ----------------------------------------------------------------------------

def _replicated_spec(shape):
    zeros = (0,) * len(shape)
    return pl.BlockSpec(shape, lambda i, _z=zeros: _z)


def pallas_encoder(x, p, dilations, filter_width, pool):
    b, q, length = x.shape
    l_enc = length - (filter_width - 1) * (1 + sum(dilations))
    lp = l_enc // pool
    lp_pad = _round_up(lp, LANE)
    cb = p["wb"].shape[0]
    kern = functools.partial(encoder_kernel, dilations=tuple(dilations),
                             filter_width=filter_width, pool=pool,
                             lp=lp, lp_pad=lp_pad)
    args = (x, p["wc"], p["bc"], p["wd"], p["bd"], p["w1"], p["b1"],
            p["wb"], p["bb"])
    in_specs = ([pl.BlockSpec((1, q, length), lambda i: (i, 0, 0))]
                + [_replicated_spec(a.shape) for a in args[1:]])
    return pl.pallas_call(
        kern,
        out_shape=jax.ShapeDtypeStruct((b, cb, lp_pad), x.dtype),
        grid=(b,),
        in_specs=in_specs,
        out_specs=pl.BlockSpec((1, cb, lp_pad), lambda i: (i, 0, 0)),
        compiler_params=pltpu.CompilerParams(
            dimension_semantics=("parallel",),
            vmem_limit_bytes=_vmem_limit_bytes()),
    )(*args)


def pallas_decoder(x, encoding, p, dilations, filter_width, output_width, lp):
    b, q, length = x.shape
    _, cb, lp_pad = encoding.shape
    out_pad = _round_up(output_width, LANE)
    # Static guard (review concern): every layer's valid length must cover the
    # skip crop z[:, lo - output_width:].
    l = length - (filter_width - 1)
    for d in dilations:
        l -= (filter_width - 1) * d
        assert l >= output_width, (l, output_width)
    kern = functools.partial(decoder_kernel, dilations=tuple(dilations),
                             filter_width=filter_width,
                             output_width=output_width, lp=lp, out_pad=out_pad)
    args = (x, encoding, p["wc"], p["bc"], p["wfg"], p["bfg"], p["wcd"], p["bcd"],
            p["wdn"], p["bdn"], p["wsk"], p["bsk"], p["w1"], p["b1"],
            p["wch"], p["bch"], p["w2"], p["b2"])
    in_specs = ([pl.BlockSpec((1, q, length), lambda i: (i, 0, 0)),
                 pl.BlockSpec((1, cb, lp_pad), lambda i: (i, 0, 0))]
                + [_replicated_spec(a.shape) for a in args[2:]])
    return pl.pallas_call(
        kern,
        out_shape=jax.ShapeDtypeStruct((b, q, out_pad), x.dtype),
        grid=(b,),
        in_specs=in_specs,
        out_specs=pl.BlockSpec((1, q, out_pad), lambda i: (i, 0, 0)),
        compiler_params=pltpu.CompilerParams(
            dimension_semantics=("parallel",),
            vmem_limit_bytes=_vmem_limit_bytes()),
    )(*args)


# ----------------------------------------------------------------------------
# Model: deterministic parameter setup + forward orchestration (glue)
# ----------------------------------------------------------------------------

def make_conv_params(key, cout, cin, k, use_bias):
    kw, kb = jax.random.split(key)
    bound = 1.0 / math.sqrt(cin * k)
    w = jax.random.uniform(kw, (cout, cin, k), jnp.float32, -bound, bound)
    if use_bias:
        b = jax.random.uniform(kb, (cout, 1), jnp.float32, -bound, bound)
    else:
        b = jnp.zeros((cout, 1), jnp.float32)
    return w, b


def taps_leading(w):
    """(Cout, Cin, K) -> (K, Cout, Cin): tap k is w_out[k] (a matmul weight)."""
    return jnp.transpose(w, (2, 0, 1))


def stack_taps(ws):
    """Per-layer (Cout, Cin, K) list -> (n_layers*K, Cout, Cin), taps contiguous per layer."""
    return jnp.concatenate([taps_leading(w) for w in ws], axis=0)


class WaveNetAutoencoderPallas:
    def __init__(self, filter_width, quantization_channel, dilations,
                 en_residual_channel, en_dilation_channel, en_bottleneck_width,
                 en_pool_kernel_size, de_residual_channel, de_dilation_channel,
                 de_skip_channel, use_bias, key):
        self.fw = filter_width
        self.Q = quantization_channel
        self.dilations = list(dilations)
        self.pool = en_pool_kernel_size
        self.receptive_field = (filter_width - 1) * (sum(dilations) + 1) + 1

        ks = iter(jax.random.split(key, 64))
        nxt = lambda: next(ks)

        en_causal = make_conv_params(nxt(), en_residual_channel, quantization_channel,
                                     filter_width, use_bias)
        bottleneck = make_conv_params(nxt(), en_bottleneck_width, en_residual_channel,
                                      1, use_bias)
        de_causal = make_conv_params(nxt(), de_residual_channel, quantization_channel,
                                     filter_width, use_bias)

        en_dil = [make_conv_params(nxt(), en_dilation_channel, en_residual_channel,
                                   filter_width, use_bias) for _ in self.dilations]
        en_dense = [make_conv_params(nxt(), en_residual_channel, en_dilation_channel,
                                     1, use_bias) for _ in self.dilations]

        de_fg = [make_conv_params(nxt(), 2 * de_dilation_channel, de_residual_channel,
                                  filter_width, use_bias) for _ in self.dilations]
        de_dense = [make_conv_params(nxt(), de_residual_channel, de_dilation_channel,
                                     1, use_bias) for _ in self.dilations]
        de_skip = [make_conv_params(nxt(), de_skip_channel, de_dilation_channel,
                                    1, use_bias) for _ in self.dilations]

        connection_1 = make_conv_params(nxt(), de_skip_channel, de_skip_channel, 1, use_bias)
        connection_2 = make_conv_params(nxt(), quantization_channel, de_skip_channel, 1, use_bias)

        # TODO(synk): the PyTorch code builds fresh randomly-initialized nn.Conv1d
        # conditioning layers inside forward(); here they are fixed deterministic weights.
        cond_convs = [make_conv_params(nxt(), 2 * de_dilation_channel, en_bottleneck_width,
                                       1, True) for _ in self.dilations]
        cond_head = make_conv_params(nxt(), de_skip_channel, en_bottleneck_width, 1, True)

        # Pack into stacked, per-tap matmul-ready layouts (done once, outside the kernels).
        self.enc_params = dict(
            wc=taps_leading(en_causal[0]), bc=en_causal[1],
            wd=stack_taps([w for w, _ in en_dil]),
            bd=jnp.stack([b for _, b in en_dil]),
            w1=jnp.stack([w[:, :, 0] for w, _ in en_dense]),
            b1=jnp.stack([b for _, b in en_dense]),
            wb=bottleneck[0][:, :, 0], bb=bottleneck[1],
        )
        self.dec_params = dict(
            wc=taps_leading(de_causal[0]), bc=de_causal[1],
            wfg=stack_taps([w for w, _ in de_fg]),
            bfg=jnp.stack([b for _, b in de_fg]),
            wcd=jnp.stack([w[:, :, 0] for w, _ in cond_convs]),
            bcd=jnp.stack([b for _, b in cond_convs]),
            wdn=jnp.stack([w[:, :, 0] for w, _ in de_dense]),
            bdn=jnp.stack([b for _, b in de_dense]),
            wsk=jnp.stack([w[:, :, 0] for w, _ in de_skip]),
            bsk=jnp.stack([b for _, b in de_skip]),
            w1=connection_1[0][:, :, 0], b1=connection_1[1],
            wch=cond_head[0][:, :, 0], bch=cond_head[1],
            w2=connection_2[0][:, :, 0], b2=connection_2[1],
        )

    def forward(self, wave_sample):
        _, _, seq_len = wave_sample.shape
        output_width = seq_len - self.receptive_field + 1
        l_enc = seq_len - (self.fw - 1) * (1 + sum(self.dilations))
        lp = l_enc // self.pool

        encoding = pallas_encoder(wave_sample, self.enc_params, self.dilations,
                                  self.fw, self.pool)          # (B, Cb, lp_pad)
        result = pallas_decoder(wave_sample, encoding, self.dec_params,
                                self.dilations, self.fw, output_width, lp)  # (B, Q, W_pad)
        result = result[:, :, :output_width]                   # drop lane padding
        # torch: result.view(-1, Q) then softmax(dim=1).  NOTE (review): this
        # reproduces the reference semantics exactly — each row groups Q
        # *consecutive flat* elements (mixing time steps of a channel), not the
        # Q channels of one timestep.  For this tiny (N, Q) shape the softmax is
        # left to XLA instead of an extra pallas_call + HBM bounce.
        flat = jnp.reshape(result, (-1, self.Q))
        return jax.nn.softmax(flat, axis=1)


# ----------------------------------------------------------------------------
# Main
# ----------------------------------------------------------------------------

if __name__ == "__main__":
    key = jax.random.PRNGKey(0)
    k_param, k_data = jax.random.split(key)

    filter_width = 2
    quantization_channel = 8
    dilations = [1, 2]
    en_residual_channel = 8
    en_dilation_channel = 8
    en_bottleneck_width = 8
    en_pool_kernel_size = 2
    de_residual_channel = 8
    de_dilation_channel = 8
    de_skip_channel = 8
    use_bias = True

    model = WaveNetAutoencoderPallas(
        filter_width, quantization_channel, dilations,
        en_residual_channel, en_dilation_channel, en_bottleneck_width,
        en_pool_kernel_size, de_residual_channel, de_dilation_channel,
        de_skip_channel, use_bias, k_param)

    batch, seq_len = 2, 32
    x = jax.random.normal(k_data, (batch, quantization_channel, seq_len), jnp.float32)

    out = model.forward(x)
    out = jax.block_until_ready(out)

    output_width = seq_len - model.receptive_field + 1
    expected_rows = batch * quantization_channel * output_width // quantization_channel
    assert out.shape == (expected_rows, quantization_channel), out.shape
    assert bool(jnp.all(jnp.isfinite(out)))
    # softmax rows sum to 1
    assert bool(jnp.allclose(jnp.sum(out, axis=1), 1.0, atol=1e-5))

    print("KERNEL_OK")
</pallas_src>

<mosaic_0001>
module attributes {stable_mosaic.version = 11 : i64} {
  func.func @encoder_kernel(%arg0: i32, %arg1: memref<1x8x32xf32, #tpu.memory_space<vmem>>, %arg2: memref<2x8x8xf32, #tpu.memory_space<vmem>>, %arg3: memref<8x1xf32, #tpu.memory_space<vmem>>, %arg4: memref<4x8x8xf32, #tpu.memory_space<vmem>>, %arg5: memref<2x8x1xf32, #tpu.memory_space<vmem>>, %arg6: memref<2x8x8xf32, #tpu.memory_space<vmem>>, %arg7: memref<2x8x1xf32, #tpu.memory_space<vmem>>, %arg8: memref<8x8xf32, #tpu.memory_space<vmem>>, %arg9: memref<8x1xf32, #tpu.memory_space<vmem>>, %arg10: memref<1x8x128xf32, #tpu.memory_space<vmem>>) attributes {dimension_semantics = [#tpu.dimension_semantics<parallel>], iteration_bounds = array<i64: 2>, scalar_prefetch = 0 : i64, scratch_operands = 0 : i64, tpu.core_type = #tpu.core_type<tc>, window_params = [{transform_indices = @transform_0, window_bounds = array<i64: 1, 8, 32>}, {pipeline_mode = #tpu.pipeline_mode<synchronous>, transform_indices = @transform_1, window_bounds = array<i64: 2, 8, 8>}, {pipeline_mode = #tpu.pipeline_mode<synchronous>, transform_indices = @transform_2, window_bounds = array<i64: 8, 1>}, {pipeline_mode = #tpu.pipeline_mode<synchronous>, transform_indices = @transform_3, window_bounds = array<i64: 4, 8, 8>}, {pipeline_mode = #tpu.pipeline_mode<synchronous>, transform_indices = @transform_4, window_bounds = array<i64: 2, 8, 1>}, {pipeline_mode = #tpu.pipeline_mode<synchronous>, transform_indices = @transform_5, window_bounds = array<i64: 2, 8, 8>}, {pipeline_mode = #tpu.pipeline_mode<synchronous>, transform_indices = @transform_6, window_bounds = array<i64: 2, 8, 1>}, {pipeline_mode = #tpu.pipeline_mode<synchronous>, transform_indices = @transform_7, window_bounds = array<i64: 8, 8>}, {pipeline_mode = #tpu.pipeline_mode<synchronous>, transform_indices = @transform_8, window_bounds = array<i64: 8, 1>}, {transform_indices = @transform_9, window_bounds = array<i64: 1, 8, 128>}]} {
    %c0 = arith.constant 0 : index
    %c0_0 = arith.constant 0 : index
    %c0_1 = arith.constant 0 : index
    %0 = vector.load %arg1[%c0, %c0_0, %c0_1] : memref<1x8x32xf32, #tpu.memory_space<vmem>>, vector<1x8x32xf32>
    %1 = vector.shape_cast %0 : vector<1x8x32xf32> to vector<8x32xf32>
    %c0_2 = arith.constant 0 : index
    %c0_3 = arith.constant 0 : index
    %c0_4 = arith.constant 0 : index
    %2 = vector.load %arg2[%c0_2, %c0_3, %c0_4] : memref<2x8x8xf32, #tpu.memory_space<vmem>>, vector<1x8x8xf32>
    %3 = vector.shape_cast %2 : vector<1x8x8xf32> to vector<8x8xf32>
    %c1 = arith.constant 1 : index
    %c0_5 = arith.constant 0 : index
    %c0_6 = arith.constant 0 : index
    %4 = vector.load %arg2[%c1, %c0_5, %c0_6] : memref<2x8x8xf32, #tpu.memory_space<vmem>>, vector<1x8x8xf32>
    %5 = vector.shape_cast %4 : vector<1x8x8xf32> to vector<8x8xf32>
    %c0_7 = arith.constant 0 : index
    %c0_8 = arith.constant 0 : index
    %6 = vector.load %arg3[%c0_7, %c0_8] : memref<8x1xf32, #tpu.memory_space<vmem>>, vector<8x1xf32>
    %7 = vector.extract_strided_slice %1 {offsets = [0, 0], sizes = [8, 31], strides = [1, 1]} : vector<8x32xf32> to vector<8x31xf32>
    %cst = arith.constant dense<0.000000e+00> : vector<8x31xf32>
    %8 = tpu.matmul %3, %7, %cst {dimension_numbers = #tpu.dot_dimension_numbers<[1], [0], [0], [1], [0, 0, 1, 1], [], []>} : vector<8x8xf32>, vector<8x31xf32>, vector<8x31xf32> -> vector<8x31xf32>
    %9 = vector.broadcast %6 : vector<8x1xf32> to vector<8x31xf32>
    %10 = arith.addf %9, %8 : vector<8x31xf32>
    %11 = vector.extract_strided_slice %1 {offsets = [0, 1], sizes = [8, 31], strides = [1, 1]} : vector<8x32xf32> to vector<8x31xf32>
    %cst_9 = arith.constant dense<0.000000e+00> : vector<8x31xf32>
    %12 = tpu.matmul %5, %11, %cst_9 {dimension_numbers = #tpu.dot_dimension_numbers<[1], [0], [0], [1], [0, 0, 1, 1], [], []>} : vector<8x8xf32>, vector<8x31xf32>, vector<8x31xf32> -> vector<8x31xf32>
    %13 = arith.addf %10, %12 : vector<8x31xf32>
    %c0_10 = arith.constant 0 : index
    %c0_11 = arith.constant 0 : index
    %c0_12 = arith.constant 0 : index
    %14 = vector.load %arg4[%c0_10, %c0_11, %c0_12] : memref<4x8x8xf32, #tpu.memory_space<vmem>>, vector<1x8x8xf32>
    %15 = vector.shape_cast %14 : vector<1x8x8xf32> to vector<8x8xf32>
    %c1_13 = arith.constant 1 : index
    %c0_14 = arith.constant 0 : index
    %c0_15 = arith.constant 0 : index
    %16 = vector.load %arg4[%c1_13, %c0_14, %c0_15] : memref<4x8x8xf32, #tpu.memory_space<vmem>>, vector<1x8x8xf32>
    %17 = vector.shape_cast %16 : vector<1x8x8xf32> to vector<8x8xf32>
    %c0_16 = arith.constant 0 : index
    %c0_17 = arith.constant 0 : index
    %c0_18 = arith.constant 0 : index
    %18 = vector.load %arg5[%c0_16, %c0_17, %c0_18] : memref<2x8x1xf32, #tpu.memory_space<vmem>>, vector<1x8x1xf32>
    %19 = vector.shape_cast %18 : vector<1x8x1xf32> to vector<8x1xf32>
    %20 = vector.extract_strided_slice %13 {offsets = [0, 0], sizes = [8, 30], strides = [1, 1]} : vector<8x31xf32> to vector<8x30xf32>
    %cst_19 = arith.constant 0.000000e+00 : f32
    %21 = vector.broadcast %cst_19 : f32 to vector<8x30xf32>
    %22 = arith.maximumf %20, %21 : vector<8x30xf32>
    %cst_20 = arith.constant dense<0.000000e+00> : vector<8x30xf32>
    %23 = tpu.matmul %15, %22, %cst_20 {dimension_numbers = #tpu.dot_dimension_numbers<[1], [0], [0], [1], [0, 0, 1, 1], [], []>} : vector<8x8xf32>, vector<8x30xf32>, vector<8x30xf32> -> vector<8x30xf32>
    %24 = vector.broadcast %19 : vector<8x1xf32> to vector<8x30xf32>
    %25 = arith.addf %24, %23 : vector<8x30xf32>
    %26 = vector.extract_strided_slice %13 {offsets = [0, 1], sizes = [8, 30], strides = [1, 1]} : vector<8x31xf32> to vector<8x30xf32>
    %cst_21 = arith.constant 0.000000e+00 : f32
    %27 = vector.broadcast %cst_21 : f32 to vector<8x30xf32>
    %28 = arith.maximumf %26, %27 : vector<8x30xf32>
    %cst_22 = arith.constant dense<0.000000e+00> : vector<8x30xf32>
    %29 = tpu.matmul %17, %28, %cst_22 {dimension_numbers = #tpu.dot_dimension_numbers<[1], [0], [0], [1], [0, 0, 1, 1], [], []>} : vector<8x8xf32>, vector<8x30xf32>, vector<8x30xf32> -> vector<8x30xf32>
    %30 = arith.addf %25, %29 : vector<8x30xf32>
    %cst_23 = arith.constant 0.000000e+00 : f32
    %31 = vector.broadcast %cst_23 : f32 to vector<8x30xf32>
    %32 = arith.maximumf %30, %31 : vector<8x30xf32>
    %c0_24 = arith.constant 0 : index
    %c0_25 = arith.constant 0 : index
    %c0_26 = arith.constant 0 : index
    %33 = vector.load %arg6[%c0_24, %c0_25, %c0_26] : memref<2x8x8xf32, #tpu.memory_space<vmem>>, vector<1x8x8xf32>
    %34 = vector.shape_cast %33 : vector<1x8x8xf32> to vector<8x8xf32>
    %cst_27 = arith.constant dense<0.000000e+00> : vector<8x30xf32>
    %35 = tpu.matmul %34, %32, %cst_27 {dimension_numbers = #tpu.dot_dimension_numbers<[1], [0], [0], [1], [0, 0, 1, 1], [], []>} : vector<8x8xf32>, vector<8x30xf32>, vector<8x30xf32> -> vector<8x30xf32>
    %c0_28 = arith.constant 0 : index
    %c0_29 = arith.constant 0 : index
    %c0_30 = arith.constant 0 : index
    %36 = vector.load %arg7[%c0_28, %c0_29, %c0_30] : memref<2x8x1xf32, #tpu.memory_space<vmem>>, vector<1x8x1xf32>
    %37 = vector.shape_cast %36 : vector<1x8x1xf32> to vector<8x1xf32>
    %38 = vector.broadcast %37 : vector<8x1xf32> to vector<8x30xf32>
    %39 = arith.addf %35, %38 : vector<8x30xf32>
    %40 = arith.addf %39, %26 : vector<8x30xf32>
    %c2 = arith.constant 2 : index
    %c0_31 = arith.constant 0 : index
    %c0_32 = arith.constant 0 : index
    %41 = vector.load %arg4[%c2, %c0_31, %c0_32] : memref<4x8x8xf32, #tpu.memory_space<vmem>>, vector<1x8x8xf32>
    %42 = vector.shape_cast %41 : vector<1x8x8xf32> to vector<8x8xf32>
    %c3 = arith.constant 3 : index
    %c0_33 = arith.constant 0 : index
    %c0_34 = arith.constant 0 : index
    %43 = vector.load %arg4[%c3, %c0_33, %c0_34] : memref<4x8x8xf32, #tpu.memory_space<vmem>>, vector<1x8x8xf32>
    %44 = vector.shape_cast %43 : vector<1x8x8xf32> to vector<8x8xf32>
    %c1_35 = arith.constant 1 : index
    %c0_36 = arith.constant 0 : index
    %c0_37 = arith.constant 0 : index
    %45 = vector.load %arg5[%c1_35, %c0_36, %c0_37] : memref<2x8x1xf32, #tpu.memory_space<vmem>>, vector<1x8x1xf32>
    %46 = vector.shape_cast %45 : vector<1x8x1xf32> to vector<8x1xf32>
    %47 = vector.extract_strided_slice %40 {offsets = [0, 0], sizes = [8, 28], strides = [1, 1]} : vector<8x30xf32> to vector<8x28xf32>
    %cst_38 = arith.constant 0.000000e+00 : f32
    %48 = vector.broadcast %cst_38 : f32 to vector<8x28xf32>
    %49 = arith.maximumf %47, %48 : vector<8x28xf32>
    %cst_39 = arith.constant dense<0.000000e+00> : vector<8x28xf32>
    %50 = tpu.matmul %42, %49, %cst_39 {dimension_numbers = #tpu.dot_dimension_numbers<[1], [0], [0], [1], [0, 0, 1, 1], [], []>} : vector<8x8xf32>, vector<8x28xf32>, vector<8x28xf32> -> vector<8x28xf32>
    %51 = vector.broadcast %46 : vector<8x1xf32> to vector<8x28xf32>
    %52 = arith.addf %51, %50 : vector<8x28xf32>
    %53 = vector.extract_strided_slice %40 {offsets = [0, 2], sizes = [8, 28], strides = [1, 1]} : vector<8x30xf32> to vector<8x28xf32>
    %cst_40 = arith.constant 0.000000e+00 : f32
    %54 = vector.broadcast %cst_40 : f32 to vector<8x28xf32>
    %55 = arith.maximumf %53, %54 : vector<8x28xf32>
    %cst_41 = arith.constant dense<0.000000e+00> : vector<8x28xf32>
    %56 = tpu.matmul %44, %55, %cst_41 {dimension_numbers = #tpu.dot_dimension_numbers<[1], [0], [0], [1], [0, 0, 1, 1], [], []>} : vector<8x8xf32>, vector<8x28xf32>, vector<8x28xf32> -> vector<8x28xf32>
    %57 = arith.addf %52, %56 : vector<8x28xf32>
    %cst_42 = arith.constant 0.000000e+00 : f32
    %58 = vector.broadcast %cst_42 : f32 to vector<8x28xf32>
    %59 = arith.maximumf %57, %58 : vector<8x28xf32>
    %c1_43 = arith.constant 1 : index
    %c0_44 = arith.constant 0 : index
    %c0_45 = arith.constant 0 : index
    %60 = vector.load %arg6[%c1_43, %c0_44, %c0_45] : memref<2x8x8xf32, #tpu.memory_space<vmem>>, vector<1x8x8xf32>
    %61 = vector.shape_cast %60 : vector<1x8x8xf32> to vector<8x8xf32>
    %cst_46 = arith.constant dense<0.000000e+00> : vector<8x28xf32>
    %62 = tpu.matmul %61, %59, %cst_46 {dimension_numbers = #tpu.dot_dimension_numbers<[1], [0], [0], [1], [0, 0, 1, 1], [], []>} : vector<8x8xf32>, vector<8x28xf32>, vector<8x28xf32> -> vector<8x28xf32>
    %c1_47 = arith.constant 1 : index
    %c0_48 = arith.constant 0 : index
    %c0_49 = arith.constant 0 : index
    %63 = vector.load %arg7[%c1_47, %c0_48, %c0_49] : memref<2x8x1xf32, #tpu.memory_space<vmem>>, vector<1x8x1xf32>
    %64 = vector.shape_cast %63 : vector<1x8x1xf32> to vector<8x1xf32>
    %65 = vector.broadcast %64 : vector<8x1xf32> to vector<8x28xf32>
    %66 = arith.addf %62, %65 : vector<8x28xf32>
    %67 = arith.addf %66, %53 : vector<8x28xf32>
    %c0_50 = arith.constant 0 : index
    %c0_51 = arith.constant 0 : index
    %68 = vector.load %arg8[%c0_50, %c0_51] : memref<8x8xf32, #tpu.memory_space<vmem>>, vector<8x8xf32>
    %cst_52 = arith.constant dense<0.000000e+00> : vector<8x28xf32>
    %69 = tpu.matmul %68, %67, %cst_52 {dimension_numbers = #tpu.dot_dimension_numbers<[1], [0], [0], [1], [0, 0, 1, 1], [], []>} : vector<8x8xf32>, vector<8x28xf32>, vector<8x28xf32> -> vector<8x28xf32>
    %c0_53 = arith.constant 0 : index
    %c0_54 = arith.constant 0 : index
    %70 = vector.load %arg9[%c0_53, %c0_54] : memref<8x1xf32, #tpu.memory_space<vmem>>, vector<8x1xf32>
    %71 = vector.broadcast %70 : vector<8x1xf32> to vector<8x28xf32>
    %72 = arith.addf %69, %71 : vector<8x28xf32>
    %73 = vector.shape_cast %72 : vector<8x28xf32> to vector<8x14x2xf32>
    %cst_55 = arith.constant dense<0.000000e+00> : vector<8x14xf32>
    %74 = vector.multi_reduction <add>, %73, %cst_55 [2] : vector<8x14x2xf32> to vector<8x14xf32>
    %cst_56 = arith.constant 2.000000e+00 : f32
    %75 = vector.broadcast %cst_56 : f32 to vector<8x14xf32>
    %76 = arith.divf %74, %75 : vector<8x14xf32>
    %cst_57 = arith.constant 0.000000e+00 : f32
    %77 = vector.broadcast %cst_57 : f32 to vector<8x114xf32>
    %78 = tpu.concatenate %76, %77 in 1 : vector<8x14xf32>, vector<8x114xf32> -> vector<8x128xf32>
    %c0_58 = arith.constant 0 : index
    %c0_59 = arith.constant 0 : index
    %c0_60 = arith.constant 0 : index
    %79 = vector.load %arg10[%c0_58, %c0_59, %c0_60] : memref<1x8x128xf32, #tpu.memory_space<vmem>>, vector<1x8x128xf32>
    %80 = vector.shape_cast %79 : vector<1x8x128xf32> to vector<8x128xf32>
    %81 = vector.shape_cast %78 : vector<8x128xf32> to vector<1x8x128xf32>
    tpu.vector_store %arg10[%c0_58, %c0_59, %c0_60], %81 {strides = array<i32>} : memref<1x8x128xf32, #tpu.memory_space<vmem>>, vector<1x8x128xf32>,
    return
  }
  func.func @transform_0(%arg0: i32) -> (i32, i32, i32) {
    %c0_i32 = arith.constant 0 : i32
    %c0_i32_0 = arith.constant 0 : i32
    %c0_i32_1 = arith.constant 0 : i32
    return %arg0, %c0_i32, %c0_i32_0 : i32, i32, i32
  }
  func.func @transform_1(%arg0: i32) -> (i32, i32, i32) {
    %c0_i32 = arith.constant 0 : i32
    %c0_i32_0 = arith.constant 0 : i32
    %c0_i32_1 = arith.constant 0 : i32
    %c0_i32_2 = arith.constant 0 : i32
    return %c0_i32, %c0_i32_0, %c0_i32_1 : i32, i32, i32
  }
  func.func @transform_2(%arg0: i32) -> (i32, i32) {
    %c0_i32 = arith.constant 0 : i32
    %c0_i32_0 = arith.constant 0 : i32
    %c0_i32_1 = arith.constant 0 : i32
    return %c0_i32, %c0_i32_0 : i32, i32
  }
  func.func @transform_3(%arg0: i32) -> (i32, i32, i32) {
    %c0_i32 = arith.constant 0 : i32
    %c0_i32_0 = arith.constant 0 : i32
    %c0_i32_1 = arith.constant 0 : i32
    %c0_i32_2 = arith.constant 0 : i32
    return %c0_i32, %c0_i32_0, %c0_i32_1 : i32, i32, i32
  }
  func.func @transform_4(%arg0: i32) -> (i32, i32, i32) {
    %c0_i32 = arith.constant 0 : i32
    %c0_i32_0 = arith.constant 0 : i32
    %c0_i32_1 = arith.constant 0 : i32
    %c0_i32_2 = arith.constant 0 : i32
    return %c0_i32, %c0_i32_0, %c0_i32_1 : i32, i32, i32
  }
  func.func @transform_5(%arg0: i32) -> (i32, i32, i32) {
    %c0_i32 = arith.constant 0 : i32
    %c0_i32_0 = arith.constant 0 : i32
    %c0_i32_1 = arith.constant 0 : i32
    %c0_i32_2 = arith.constant 0 : i32
    return %c0_i32, %c0_i32_0, %c0_i32_1 : i32, i32, i32
  }
  func.func @transform_6(%arg0: i32) -> (i32, i32, i32) {
    %c0_i32 = arith.constant 0 : i32
    %c0_i32_0 = arith.constant 0 : i32
    %c0_i32_1 = arith.constant 0 : i32
    %c0_i32_2 = arith.constant 0 : i32
    return %c0_i32, %c0_i32_0, %c0_i32_1 : i32, i32, i32
  }
  func.func @transform_7(%arg0: i32) -> (i32, i32) {
    %c0_i32 = arith.constant 0 : i32
    %c0_i32_0 = arith.constant 0 : i32
    %c0_i32_1 = arith.constant 0 : i32
    return %c0_i32, %c0_i32_0 : i32, i32
  }
  func.func @transform_8(%arg0: i32) -> (i32, i32) {
    %c0_i32 = arith.constant 0 : i32
    %c0_i32_0 = arith.constant 0 : i32
    %c0_i32_1 = arith.constant 0 : i32
    return %c0_i32, %c0_i32_0 : i32, i32
  }
  func.func @transform_9(%arg0: i32) -> (i32, i32, i32) {
    %c0_i32 = arith.constant 0 : i32
    %c0_i32_0 = arith.constant 0 : i32
    %c0_i32_1 = arith.constant 0 : i32
    return %arg0, %c0_i32, %c0_i32_0 : i32, i32, i32
  }
}

</mosaic_0001>

<llo_original>
// kernel: tpu_custom_call.1
$region0: #{tpu_custom_call.1}
  #allocation0 [shape = 'u32[]', space=smem, size = 0x4, offset = 0x4, fixed_abs, tag = 'smem constant byte address 0x4 - core index']
  #allocation1 [shape = 'u32[144,128]{1,0:T(1,128)}', space=vmem, size = 0x12000, scoped, tag = 'internal scratch']
  %s0 = inlined_call_operand.vmem [shape: f32[2,8,32], index: 0, kind: input, shape index: {}]
  %s1 = inlined_call_operand.hbm [shape: f32[2,8,8], index: 1, kind: input, shape index: {}]
  %s2 = inlined_call_operand.vmem [shape: f32[8,1], index: 2, kind: input, shape index: {}]
  %s3 = inlined_call_operand.vmem [shape: f32[4,8,8], index: 3, kind: input, shape index: {}]
  %s4 = inlined_call_operand.vmem [shape: f32[2,8,1], index: 4, kind: input, shape index: {}]
  %s5 = inlined_call_operand.hbm [shape: f32[2,8,8], index: 5, kind: input, shape index: {}]
  %s6 = inlined_call_operand.vmem [shape: f32[2,8,1], index: 6, kind: input, shape index: {}]
  %s7 = inlined_call_operand.vmem [shape: f32[8,8], index: 7, kind: input, shape index: {}]
  %s8 = inlined_call_operand.vmem [shape: f32[8,1], index: 8, kind: input, shape index: {}]
  %s9 = inlined_call_operand.hbm [shape: f32[2,8,128], index: 9, kind: output, shape index: {}]
  %s10 = sld [smem:[#allocation0]]
  $region77: #{tpu_custom_call.1} parent=0
    _
  %s12 = ssub.s32 1, %s10
  %s13 = scalar_select 0, %s12, %s10
  $region1: #{tpu_custom_call.1} parent=0
    #allocation2 [shape = 'u8[8192]{0}', space=vmem, size = 0x2000, scoped, tag = 'input window, operand 1, single buffered']
    #allocation3 [shape = 's32[2]{0}', space=sflag, size = 0x8, scoped, tag = 'scoped memory for tpu_custom_call.1']
    #allocation4 [shape = 's32[2]{0}', space=sflag, size = 0x8, scoped, tag = 'scoped memory for tpu_custom_call.1']
    #allocation5 [shape = 'u8[8192]{0}', space=vmem, size = 0x2000, scoped, tag = 'input window, operand 5, single buffered']
    #allocation6 [shape = 's32[1]{0}', space=sflag, size = 0x4, scoped, tag = 'scoped memory for tpu_custom_call.1']
    #allocation7 [shape = 'u8[8192]{0}', space=vmem, size = 0x2000, scoped, tag = 'output window, operand 0']
    %14 = vsyncpa [#allocation3], 0
    %15 = vsyncpa [#allocation6], 0
    %16 = vsyncpa [#allocation4], 0
    %s17 = scalar_lea.sflag [#allocation4], 1
    %18 = vsyncpa %s17, 0
    loop: start=0, step=1, limit=4
    $region2: #{tpu_custom_call.1} parent=1 // loop_pre_header
      _
    $region3: #{tpu_custom_call.1} parent=1 // loop_header
      %s20 = sphi 0, %s24
      %p21 = scmp.ge.s32.totalorder %s20, 4
      %s30 = sphi 0, %s32
      %s33 = sphi 0, %s30
      %s34 = sphi 0, %s33
      %s50 = sphi 0, %s34
      %s54 = sphi 0, %s54
      %s56 = sphi 0, %s54
      %s57 = sphi 0, %s56
      %s71 = sphi 0, %s57
      %s75 = sphi 0, %s75
      %s77 = sphi 0, %s75
      %s78 = sphi 0, %s77
      %s92 = sphi 0, %s78
      %s96 = sphi 0, %s96
      %s98 = sphi 0, %s96
      %s99 = sphi 0, %s98
      %s113 = sphi 0, %s99
      %s117 = sphi 0, %s117
      %s119 = sphi 0, %s117
      %s120 = sphi 0, %s119
      %s134 = sphi 0, %s120
      %s138 = sphi 0, %s138
      %s140 = sphi 0, %s138
      %s141 = sphi 0, %s140
      %s155 = sphi 0, %s141
      %s159 = sphi 0, %s159
      %s161 = sphi 0, %s159
      %s162 = sphi 0, %s161
      %s176 = sphi 0, %s162
      %s180 = sphi 0, %s180
      %s182 = sphi 0, %s180
      %s183 = sphi 0, %s182
      %s197 = sphi 0, %s183
      %s201 = sphi 0, %s201
      %s203 = sphi 0, %s201
      %s204 = sphi 0, %s203
      %s218 = sphi 0, %s204
      %s224 = sphi 0, %s226
      %s227 = sphi 0, %s224
      %s228 = sphi 0, %s227
      %s244 = sphi 0, %s228
    $region4: #{tpu_custom_call.1} parent=1 // loop_header_branch
      %23 = sbr.rel (%p21) target = $region8
    $region5: #{tpu_custom_call.1} parent=1 // loop_body
      %s25 = ssub.s32 %s20, 1
      %s26 = ssub.s32 %s20, 2
      %s27 = sadd.s32 %s20, 1
      %s28 = ssub.s32 %s20, %s27
      %p29 = scmp.eq.s32.totalorder %s28, 0
      %s31 = sadd.s32 %s30, 1
      %s32 = scalar_select %p29, %s30, %s31
      %p35 = pneg %p29
      %p36 = scmp.eq.s32.totalorder %s20, 1
      %p37 = por %p35, %p36
      %p38 = scmp.ne.s32.totalorder %s30, %s33
      %p39 = scmp.eq.s32.totalorder %s20, 0
      %p40 = por %p38, %p39
      %p41 = scmp.ne.s32.totalorder %s30, %s33
      %p42 = scmp.eq.s32.totalorder %s25, 1
      %p43 = por %p41, %p42
      %p44 = scmp.ne.s32.totalorder %s33, %s34
      %p45 = scmp.eq.s32.totalorder %s25, 0
      %p46 = por %p44, %p45
      %p47 = scmp.ne.s32.totalorder %s33, %s34
      %p48 = scmp.eq.s32.totalorder %s26, 1
      %p49 = por %p47, %p48
      %p51 = scmp.ne.s32.totalorder %s34, %s50
      %p52 = scmp.eq.s32.totalorder %s26, 0
      %p53 = por %p51, %p52
      %s55 = sadd.s32 %s54, 1
      %p58 = scmp.eq.s32.totalorder %s20, 1
      %p59 = scmp.ne.s32.totalorder %s54, %s56
      %p60 = scmp.eq.s32.totalorder %s20, 0
      %p61 = por %p59, %p60
      %p62 = scmp.ne.s32.totalorder %s54, %s56
      %p63 = scmp.eq.s32.totalorder %s25, 1
      %p64 = por %p62, %p63
      %p65 = scmp.ne.s32.totalorder %s56, %s57
      %p66 = scmp.eq.s32.totalorder %s25, 0
      %p67 = por %p65, %p66
      %p68 = scmp.ne.s32.totalorder %s56, %s57
      %p69 = scmp.eq.s32.totalorder %s26, 1
      %p70 = por %p68, %p69
      %p72 = scmp.ne.s32.totalorder %s57, %s71
      %p73 = scmp.eq.s32.totalorder %s26, 0
      %p74 = por %p72, %p73
      %s76 = sadd.s32 %s75, 1
      %p79 = scmp.eq.s32.totalorder %s20, 1
      %p80 = scmp.ne.s32.totalorder %s75, %s77
      %p81 = scmp.eq.s32.totalorder %s20, 0
      %p82 = por %p80, %p81
      %p83 = scmp.ne.s32.totalorder %s75, %s77
      %p84 = scmp.eq.s32.totalorder %s25, 1
      %p85 = por %p83, %p84
      %p86 = scmp.ne.s32.totalorder %s77, %s78
      %p87 = scmp.eq.s32.totalorder %s25, 0
      %p88 = por %p86, %p87
      %p89 = scmp.ne.s32.totalorder %s77, %s78
      %p90 = scmp.eq.s32.totalorder %s26, 1
      %p91 = por %p89, %p90
      %p93 = scmp.ne.s32.totalorder %s78, %s92
      %p94 = scmp.eq.s32.totalorder %s26, 0
      %p95 = por %p93, %p94
      %s97 = sadd.s32 %s96, 1
      %p100 = scmp.eq.s32.totalorder %s20, 1
      %p101 = scmp.ne.s32.totalorder %s96, %s98
      %p102 = scmp.eq.s32.totalorder %s20, 0
      %p103 = por %p101, %p102
      %p104 = scmp.ne.s32.totalorder %s96, %s98
      %p105 = scmp.eq.s32.totalorder %s25, 1
      %p106 = por %p104, %p105
      %p107 = scmp.ne.s32.totalorder %s98, %s99
      %p108 = scmp.eq.s32.totalorder %s25, 0
      %p109 = por %p107, %p108
      %p110 = scmp.ne.s32.totalorder %s98, %s99
      %p111 = scmp.eq.s32.totalorder %s26, 1
      %p112 = por %p110, %p111
      %p114 = scmp.ne.s32.totalorder %s99, %s113
      %p115 = scmp.eq.s32.totalorder %s26, 0
      %p116 = por %p114, %p115
      %s118 = sadd.s32 %s117, 1
      %p121 = scmp.eq.s32.totalorder %s20, 1
      %p122 = scmp.ne.s32.totalorder %s117, %s119
      %p123 = scmp.eq.s32.totalorder %s20, 0
      %p124 = por %p122, %p123
      %p125 = scmp.ne.s32.totalorder %s117, %s119
      %p126 = scmp.eq.s32.totalorder %s25, 1
      %p127 = por %p125, %p126
      %p128 = scmp.ne.s32.totalorder %s119, %s120
      %p129 = scmp.eq.s32.totalorder %s25, 0
      %p130 = por %p128, %p129
      %p131 = scmp.ne.s32.totalorder %s119, %s120
      %p132 = scmp.eq.s32.totalorder %s26, 1
      %p133 = por %p131, %p132
      %p135 = scmp.ne.s32.totalorder %s120, %s134
      %p136 = scmp.eq.s32.totalorder %s26, 0
      %p137 = por %p135, %p136
      %s139 = sadd.s32 %s138, 1
      %p142 = scmp.eq.s32.totalorder %s20, 1
      %p143 = scmp.ne.s32.totalorder %s138, %s140
      %p144 = scmp.eq.s32.totalorder %s20, 0
      %p145 = por %p143, %p144
      %p146 = scmp.ne.s32.totalorder %s138, %s140
      %p147 = scmp.eq.s32.totalorder %s25, 1
      %p148 = por %p146, %p147
      %p149 = scmp.ne.s32.totalorder %s140, %s141
      %p150 = scmp.eq.s32.totalorder %s25, 0
      %p151 = por %p149, %p150
      %p152 = scmp.ne.s32.totalorder %s140, %s141
      %p153 = scmp.eq.s32.totalorder %s26, 1
      %p154 = por %p152, %p153
      %p156 = scmp.ne.s32.totalorder %s141, %s155
      %p157 = scmp.eq.s32.totalorder %s26, 0
      %p158 = por %p156, %p157
      %s160 = sadd.s32 %s159, 1
      %p163 = scmp.eq.s32.totalorder %s20, 1
      %p164 = scmp.ne.s32.totalorder %s159, %s161
      %p165 = scmp.eq.s32.totalorder %s20, 0
      %p166 = por %p164, %p165
      %p167 = scmp.ne.s32.totalorder %s159, %s161
      %p168 = scmp.eq.s32.totalorder %s25, 1
      %p169 = por %p167, %p168
      %p170 = scmp.ne.s32.totalorder %s161, %s162
      %p171 = scmp.eq.s32.totalorder %s25, 0
      %p172 = por %p170, %p171
      %p173 = scmp.ne.s32.totalorder %s161, %s162
      %p174 = scmp.eq.s32.totalorder %s26, 1
      %p175 = por %p173, %p174
      %p177 = scmp.ne.s32.totalorder %s162, %s176
      %p178 = scmp.eq.s32.totalorder %s26, 0
      %p179 = por %p177, %p178
      %s181 = sadd.s32 %s180, 1
      %p184 = scmp.eq.s32.totalorder %s20, 1
      %p185 = scmp.ne.s32.totalorder %s180, %s182
      %p186 = scmp.eq.s32.totalorder %s20, 0
      %p187 = por %p185, %p186
      %p188 = scmp.ne.s32.totalorder %s180, %s182
      %p189 = scmp.eq.s32.totalorder %s25, 1
      %p190 = por %p188, %p189
      %p191 = scmp.ne.s32.totalorder %s182, %s183
      %p192 = scmp.eq.s32.totalorder %s25, 0
      %p193 = por %p191, %p192
      %p194 = scmp.ne.s32.totalorder %s182, %s183
      %p195 = scmp.eq.s32.totalorder %s26, 1
      %p196 = por %p194, %p195
      %p198 = scmp.ne.s32.totalorder %s183, %s197
      %p199 = scmp.eq.s32.totalorder %s26, 0
      %p200 = por %p198, %p199
      %s202 = sadd.s32 %s201, 1
      %p205 = scmp.eq.s32.totalorder %s20, 1
      %p206 = scmp.ne.s32.totalorder %s201, %s203
      %p207 = scmp.eq.s32.totalorder %s20, 0
      %p208 = por %p206, %p207
      %p209 = scmp.ne.s32.totalorder %s201, %s203
      %p210 = scmp.eq.s32.totalorder %s25, 1
      %p211 = por %p209, %p210
      %p212 = scmp.ne.s32.totalorder %s203, %s204
      %p213 = scmp.eq.s32.totalorder %s25, 0
      %p214 = por %p212, %p213
      %p215 = scmp.ne.s32.totalorder %s203, %s204
      %p216 = scmp.eq.s32.totalorder %s26, 1
      %p217 = por %p215, %p216
      %p219 = scmp.ne.s32.totalorder %s204, %s218
      %p220 = scmp.eq.s32.totalorder %s26, 0
      %p221 = por %p219, %p220
      %s222 = ssub.s32 %s20, %s27
      %p223 = scmp.eq.s32.totalorder %s222, 0
      %s225 = sadd.s32 %s224, 1
      %s226 = scalar_select %p223, %s224, %s225
      %p229 = pneg %p223
      %p230 = scmp.eq.s32.totalorder %s20, 1
      %p231 = por %p229, %p230
      %p232 = scmp.ne.s32.totalorder %s224, %s227
      %p233 = scmp.eq.s32.totalorder %s20, 0
      %p234 = por %p232, %p233
      %p235 = scmp.ne.s32.totalorder %s224, %s227
      %p236 = scmp.eq.s32.totalorder %s25, 1
      %p237 = por %p235, %p236
      %p238 = scmp.ne.s32.totalorder %s227, %s228
      %p239 = scmp.eq.s32.totalorder %s25, 0
      %p240 = por %p238, %p239
      %p241 = scmp.ne.s32.totalorder %s227, %s228
      %p242 = scmp.eq.s32.totalorder %s26, 1
      %p243 = por %p241, %p242
      %p245 = scmp.ne.s32.totalorder %s228, %s244
      %p246 = scmp.eq.s32.totalorder %s26, 0
      %p247 = por %p245, %p246
      %p248 = scmp.le.s32.totalorder 1, %s20
      %p249 = scmp.lt.s32.totalorder %s20, 3
      %p250 = pnand %p248, %p249
      %p251 = pneg %p250
      // Predicated region
      $region9: #{tpu_custom_call.1} parent=5 // pred_check
        _
      $region10: #{tpu_custom_call.1} parent=5 // pred_check_branch
        %253 = sbr.rel (%p250) target = $region12
      $region11: #{tpu_custom_call.1} parent=5 // pred_region
        %s254 = ssub.s32 %s20, 1
        // Predicated region
        $region13: #{tpu_custom_call.1} parent=11 // pred_check
          %p255 = pneg %p67
        $region14: #{tpu_custom_call.1} parent=11 // pred_check_branch
          %257 = sbr.rel (%p255) target = $region16
        $region15: #{tpu_custom_call.1} parent=11 // pred_region
          %s259 = ssub.s32 256, 256
          %260 = vsyncadd [#allocation3], %s259
          %s261 = sshll.u32 [#allocation2], 4
          %s262 = int_to_ptr.vmem [resolvable:$true] %s261
          %267 = dma.hbm_to_vmem [thread:$0]  %s1, 256, %s262, [#allocation3], 128, 128, 8
        $region16: #{tpu_custom_call.1} parent=11 // pred_fallthru
          _
        // Predicated region
        $region17: #{tpu_custom_call.1} parent=11 // pred_check
          %p268 = pneg %p88
        $region18: #{tpu_custom_call.1} parent=11 // pred_check_branch
          %270 = sbr.rel (%p268) target = $region20
        $region19: #{tpu_custom_call.1} parent=11 // pred_region
          _
        $region20: #{tpu_custom_call.1} parent=11 // pred_fallthru
          _
        // Predicated region
        $region21: #{tpu_custom_call.1} parent=11 // pred_check
          %p271 = pneg %p109
        $region22: #{tpu_custom_call.1} parent=11 // pred_check_branch
          %273 = sbr.rel (%p271) target = $region24
        $region23: #{tpu_custom_call.1} parent=11 // pred_region
          _
        $region24: #{tpu_custom_call.1} parent=11 // pred_fallthru
          _
        // Predicated region
        $region25: #{tpu_custom_call.1} parent=11 // pred_check
          %p274 = pneg %p130
        $region26: #{tpu_custom_call.1} parent=11 // pred_check_branch
          %276 = sbr.rel (%p274) target = $region28
        $region27: #{tpu_custom_call.1} parent=11 // pred_region
          _
        $region28: #{tpu_custom_call.1} parent=11 // pred_fallthru
          _
        // Predicated region
        $region29: #{tpu_custom_call.1} parent=11 // pred_check
          %p277 = pneg %p151
        $region30: #{tpu_custom_call.1} parent=11 // pred_check_branch
          %279 = sbr.rel (%p277) target = $region32
        $region31: #{tpu_custom_call.1} parent=11 // pred_region
          %s281 = ssub.s32 256, 256
          %282 = vsyncadd [#allocation6], %s281
          %s283 = sshll.u32 [#allocation5], 4
          %s284 = int_to_ptr.vmem [resolvable:$true] %s283
          %289 = dma.hbm_to_vmem [thread:$0]  %s5, 256, %s284, [#allocation6], 128, 128, 8
        $region32: #{tpu_custom_call.1} parent=11 // pred_fallthru
          _
        // Predicated region
        $region33: #{tpu_custom_call.1} parent=11 // pred_check
          %p290 = pneg %p172
        $region34: #{tpu_custom_call.1} parent=11 // pred_check_branch
          %292 = sbr.rel (%p290) target = $region36
        $region35: #{tpu_custom_call.1} parent=11 // pred_region
          _
        $region36: #{tpu_custom_call.1} parent=11 // pred_fallthru
          _
        // Predicated region
        $region37: #{tpu_custom_call.1} parent=11 // pred_check
          %p293 = pneg %p193
        $region38: #{tpu_custom_call.1} parent=11 // pred_check_branch
          %295 = sbr.rel (%p293) target = $region40
        $region39: #{tpu_custom_call.1} parent=11 // pred_region
          _
        $region40: #{tpu_custom_call.1} parent=11 // pred_fallthru
          _
        // Predicated region
        $region41: #{tpu_custom_call.1} parent=11 // pred_check
          %p296 = pneg %p214
        $region42: #{tpu_custom_call.1} parent=11 // pred_check_branch
          %298 = sbr.rel (%p296) target = $region44
        $region43: #{tpu_custom_call.1} parent=11 // pred_region
          _
        $region44: #{tpu_custom_call.1} parent=11 // pred_fallthru
          _
      $region12: #{tpu_custom_call.1} parent=5 // pred_fallthru
        _
      %p299 = scmp.lt.s32.totalorder %s20, 2
      // Predicated region
      $region45: #{tpu_custom_call.1} parent=5 // pred_check
        %p300 = pneg %p299
      $region46: #{tpu_custom_call.1} parent=5 // pred_check_branch
        %302 = sbr.rel (%p300) target = $region48
      $region47: #{tpu_custom_call.1} parent=5 // pred_region
        // Predicated region
        $region49: #{tpu_custom_call.1} parent=47 // pred_check
          %p303 = pneg %p40
        $region50: #{tpu_custom_call.1} parent=47 // pred_check_branch
          %305 = sbr.rel (%p303) target = $region52
        $region51: #{tpu_custom_call.1} parent=47 // pred_region
          %p306 = scmp.lt.s32.totalorder %s20, 1
          %s307 = scalar_select %p306, %s20, 1
          %s308 = smul.addr %s307, 8
          %s309 = scalar_lea.vmem %s0, %s308
        $region52: #{tpu_custom_call.1} parent=47 // pred_fallthru
          _
      $region48: #{tpu_custom_call.1} parent=5 // pred_fallthru
        _
      %p310 = scmp.le.s32.totalorder 1, %s20
      %p311 = scmp.lt.s32.totalorder %s20, 3
      %p312 = pnand %p310, %p311
      %p313 = pneg %p312
      // Predicated region
      $region53: #{tpu_custom_call.1} parent=5 // pred_check
        _
      $region54: #{tpu_custom_call.1} parent=5 // pred_check_branch
        %315 = sbr.rel (%p312) target = $region56
      $region55: #{tpu_custom_call.1} parent=5 // pred_region
        %s316 = ssub.s32 %s20, 1
        // Predicated region
        $region57: #{tpu_custom_call.1} parent=55 // pred_check
          %p317 = pneg %p67
        $region58: #{tpu_custom_call.1} parent=55 // pred_check_branch
          %319 = sbr.rel (%p317) target = $region60
        $region59: #{tpu_custom_call.1} parent=55 // pred_region
          %320 = dma.done [#allocation3], 256
        $region60: #{tpu_custom_call.1} parent=55 // pred_fallthru
          _
        // Predicated region
        $region61: #{tpu_custom_call.1} parent=55 // pred_check
          %p321 = pneg %p151
        $region62: #{tpu_custom_call.1} parent=55 // pred_check_branch
          %323 = sbr.rel (%p321) target = $region64
        $region63: #{tpu_custom_call.1} parent=55 // pred_region
          %324 = dma.done [#allocation6], 256
        $region64: #{tpu_custom_call.1} parent=55 // pred_fallthru
          _
        %p325 = scmp.lt.s32.totalorder %s25, 1
        %s326 = scalar_select %p325, %s25, 1
        %s327 = smul.addr %s326, 8
        %s328 = scalar_lea.vmem %s0, %s327
        %p329 = pneg %p46
        %p330 = pneg %p43
        %p331 = pneg %p67
        %p332 = pneg %p64
        %p333 = pneg %p88
        %p334 = pneg %p85
        %p335 = pneg %p109
        %p336 = pneg %p106
        %p337 = pneg %p130
        %p338 = pneg %p127
        %p339 = pneg %p151
        %p340 = pneg %p148
        %p341 = pneg %p172
        %p342 = pneg %p169
        %p343 = pneg %p193
        %p344 = pneg %p190
        %p345 = pneg %p214
        %p346 = pneg %p211
        %p347 = pneg %p240
        %p348 = pneg %p237
        %s349 = sand.u32 %s227, 1
        %s350 = scalar_lea.sflag [#allocation4], %s349
        %s351 = sand.u32 %s227, 1
        %s352 = smul.addr %s351, 8
        %s353 = scalar_lea.vmem [#allocation7], %s352
        %p354 = scmp.lt.s32.totalorder %s25, 1
        %s355 = scalar_select %p354, %s25, 1
        %s356 = smul.addr %s355, 8
        %s357 = scalar_lea.vmem %s0, %s356
        %v358 = vld [vmem:[%s357] sm:$0xff]
        %v359 = vld [vmem:[#allocation2] sm:$0xff]
        %s360 = scalar_lea.vmem [#allocation2], 8
        %v361 = vld [vmem:[%s360] sm:$0xff]
        %v362 = vld [vmem:[%s2] sm:$0xff]
        %vm363 = vcmask 64512
        %v365 = vsel %vm363, %v359, 0
        %367 = vmatprep.subr.mxu0 0.0
        %368 = vmatpush1.msra.mxu0 0.0
        %369 = vmatprep.subr.mxu0 0.0
        %370 = vmatpush1.msra.mxu0 0.0
        %371 = vmatprep.subr.mxu0 0.0
        %372 = vmatpush1.msra.mxu0 0.0
        %373 = vmatprep.subr.mxu0 0.0
        %374 = vmatpush1.msra.mxu0 0.0
        %375 = vmatprep.subr.mxu0 0.0
        %376 = vmatpush1.msra.mxu0 0.0
        %377 = vmatprep.subr.mxu0 0.0
        %378 = vmatpush1.msra.mxu0 0.0
        %379 = vmatprep.subr.mxu0 0.0
        %380 = vmatpush1.msra.mxu0 0.0
        %381 = vmatprep.subr.mxu0 0.0
        %382 = vmatpush1.msra.mxu0 0.0
        %383 = vmatprep.subr.mxu0 0.0
        %384 = vmatpush1.msra.mxu0 0.0
        %385 = vmatprep.subr.mxu0 0.0
        %386 = vmatpush1.msra.mxu0 0.0
        %387 = vmatprep.subr.mxu0 0.0
        %388 = vmatpush1.msra.mxu0 0.0
        %389 = vmatprep.subr.mxu0 0.0
        %390 = vmatpush1.msra.mxu0 0.0
        %391 = vmatprep.subr.mxu0 0.0
        %392 = vmatpush1.msra.mxu0 0.0
        %393 = vmatprep.subr.mxu0 0.0
        %394 = vmatpush1.msra.mxu0 0.0
        %395 = vmatprep.subr.mxu0 0.0
        %396 = vmatpush1.msra.mxu0 0.0
        %397 = vmatprep.subr.mxu0 0.0
        %398 = vmatpush1.msra.mxu0 %v358
        %399 = vmatprep.subr.mxu0 0.0
        %400 = vmatpush2.msra.mxu0 0.0
        %401 = vmatprep.subr.mxu0 0.0
        %402 = vmatpush2.msra.mxu0 0.0
        %403 = vmatprep.subr.mxu0 0.0
        %404 = vmatpush2.msra.mxu0 0.0
        %405 = vmatprep.subr.mxu0 0.0
        %406 = vmatpush2.msra.mxu0 0.0
        %407 = vmatprep.subr.mxu0 0.0
        %408 = vmatpush2.msra.mxu0 0.0
        %409 = vmatprep.subr.mxu0 0.0
        %410 = vmatpush2.msra.mxu0 0.0
        %411 = vmatprep.subr.mxu0 0.0
        %412 = vmatpush2.msra.mxu0 0.0
        %413 = vmatprep.subr.mxu0 0.0
        %414 = vmatpush2.msra.mxu0 0.0
        %415 = vmatprep.subr.mxu0 0.0
        %416 = vmatpush2.msra.mxu0 0.0
        %417 = vmatprep.subr.mxu0 0.0
        %418 = vmatpush2.msra.mxu0 0.0
        %419 = vmatprep.subr.mxu0 0.0
        %420 = vmatpush2.msra.mxu0 0.0
        %421 = vmatprep.subr.mxu0 0.0
        %422 = vmatpush2.msra.mxu0 0.0
        %423 = vmatprep.subr.mxu0 0.0
        %424 = vmatpush2.msra.mxu0 0.0
        %425 = vmatprep.subr.mxu0 0.0
        %426 = vmatpush2.msra.mxu0 0.0
        %427 = vmatprep.subr.mxu0 0.0
        %428 = vmatpush2.msra.mxu0 0.0
        %429 = vmatprep.subr.mxu0 0.0
        %430 = vmatpush2.msra.mxu0 0.0
        %431 = vmatprep.mubr.f32.mxu0 0.0
        %432 = vmatmul.mubr.f32.gmra.mxu0 %v365
        %v433 = vpop.f32.mrf.mxu0
        %v434 = vadd.f32 0.0, %v433
        %v435 = vpop.f32.mrf.mxu0
        %436 = vdwg.mxu0
        %438 = vset.pattern.permute.xlu0 0
        %439 = vperm.xlu0 %438, %v362
        %v440 = vpop.permute.xlu0 %439
        %v442 = vadd.f32 %v440, %v434
        %444 = vrot.lane.b32.xlu0 %v358, 127
        %v445 = vpop.permute.xlu0 %444
        %v448 = vsel %vm363, %v361, 0
        %450 = vmatprep.subr.mxu0 0.0
        %451 = vmatpush1.msra.mxu0 0.0
        %452 = vmatprep.subr.mxu0 0.0
        %453 = vmatpush1.msra.mxu0 0.0
        %454 = vmatprep.subr.mxu0 0.0
        %455 = vmatpush1.msra.mxu0 0.0
        %456 = vmatprep.subr.mxu0 0.0
        %457 = vmatpush1.msra.mxu0 0.0
        %458 = vmatprep.subr.mxu0 0.0
        %459 = vmatpush1.msra.mxu0 0.0
        %460 = vmatprep.subr.mxu0 0.0
        %461 = vmatpush1.msra.mxu0 0.0
        %462 = vmatprep.subr.mxu0 0.0
        %463 = vmatpush1.msra.mxu0 0.0
        %464 = vmatprep.subr.mxu0 0.0
        %465 = vmatpush1.msra.mxu0 0.0
        %466 = vmatprep.subr.mxu0 0.0
        %467 = vmatpush1.msra.mxu0 0.0
        %468 = vmatprep.subr.mxu0 0.0
        %469 = vmatpush1.msra.mxu0 0.0
        %470 = vmatprep.subr.mxu0 0.0
        %471 = vmatpush1.msra.mxu0 0.0
        %472 = vmatprep.subr.mxu0 0.0
        %473 = vmatpush1.msra.mxu0 0.0
        %474 = vmatprep.subr.mxu0 0.0
        %475 = vmatpush1.msra.mxu0 0.0
        %476 = vmatprep.subr.mxu0 0.0
        %477 = vmatpush1.msra.mxu0 0.0
        %478 = vmatprep.subr.mxu0 0.0
        %479 = vmatpush1.msra.mxu0 0.0
        %480 = vmatprep.subr.mxu0 0.0
        %481 = vmatpush1.msra.mxu0 %v445
        %482 = vmatprep.subr.mxu0 0.0
        %483 = vmatpush2.msra.mxu0 0.0
        %484 = vmatprep.subr.mxu0 0.0
        %485 = vmatpush2.msra.mxu0 0.0
        %486 = vmatprep.subr.mxu0 0.0
        %487 = vmatpush2.msra.mxu0 0.0
        %488 = vmatprep.subr.mxu0 0.0
        %489 = vmatpush2.msra.mxu0 0.0
        %490 = vmatprep.subr.mxu0 0.0
        %491 = vmatpush2.msra.mxu0 0.0
        %492 = vmatprep.subr.mxu0 0.0
        %493 = vmatpush2.msra.mxu0 0.0
        %494 = vmatprep.subr.mxu0 0.0
        %495 = vmatpush2.msra.mxu0 0.0
        %496 = vmatprep.subr.mxu0 0.0
        %497 = vmatpush2.msra.mxu0 0.0
        %498 = vmatprep.subr.mxu0 0.0
        %499 = vmatpush2.msra.mxu0 0.0
        %500 = vmatprep.subr.mxu0 0.0
        %501 = vmatpush2.msra.mxu0 0.0
        %502 = vmatprep.subr.mxu0 0.0
        %503 = vmatpush2.msra.mxu0 0.0
        %504 = vmatprep.subr.mxu0 0.0
        %505 = vmatpush2.msra.mxu0 0.0
        %506 = vmatprep.subr.mxu0 0.0
        %507 = vmatpush2.msra.mxu0 0.0
        %508 = vmatprep.subr.mxu0 0.0
        %509 = vmatpush2.msra.mxu0 0.0
        %510 = vmatprep.subr.mxu0 0.0
        %511 = vmatpush2.msra.mxu0 0.0
        %512 = vmatprep.subr.mxu0 0.0
        %513 = vmatpush2.msra.mxu0 0.0
        %514 = vmatprep.mubr.f32.mxu0 0.0
        %515 = vmatmul.mubr.f32.gmra.mxu0 %v448
        %v516 = vpop.f32.mrf.mxu0
        %v517 = vadd.f32 0.0, %v516
        %v518 = vpop.f32.mrf.mxu0
        %519 = vdwg.mxu0
        %v520 = vadd.f32 %v442, %v517
        %v521 = vld [vmem:[%s3] sm:$0xff]
        %s522 = scalar_lea.vmem %s3, 8
        %v523 = vld [vmem:[%s522] sm:$0xff]
        %v524 = vld [vmem:[%s4] sm:$0xff]
        %v525 = vmax.f32 %v520, 0.0
        %v527 = vsel %vm363, %v521, 0
        %529 = vmatprep.subr.mxu0 0.0
        %530 = vmatpush1.msra.mxu0 0.0
        %531 = vmatprep.subr.mxu0 0.0
        %532 = vmatpush1.msra.mxu0 0.0
        %533 = vmatprep.subr.mxu0 0.0
        %534 = vmatpush1.msra.mxu0 0.0
        %535 = vmatprep.subr.mxu0 0.0
        %536 = vmatpush1.msra.mxu0 0.0
        %537 = vmatprep.subr.mxu0 0.0
        %538 = vmatpush1.msra.mxu0 0.0
        %539 = vmatprep.subr.mxu0 0.0
        %540 = vmatpush1.msra.mxu0 0.0
        %541 = vmatprep.subr.mxu0 0.0
        %542 = vmatpush1.msra.mxu0 0.0
        %543 = vmatprep.subr.mxu0 0.0
        %544 = vmatpush1.msra.mxu0 0.0
        %545 = vmatprep.subr.mxu0 0.0
        %546 = vmatpush1.msra.mxu0 0.0
        %547 = vmatprep.subr.mxu0 0.0
        %548 = vmatpush1.msra.mxu0 0.0
        %549 = vmatprep.subr.mxu0 0.0
        %550 = vmatpush1.msra.mxu0 0.0
        %551 = vmatprep.subr.mxu0 0.0
        %552 = vmatpush1.msra.mxu0 0.0
        %553 = vmatprep.subr.mxu0 0.0
        %554 = vmatpush1.msra.mxu0 0.0
        %555 = vmatprep.subr.mxu0 0.0
        %556 = vmatpush1.msra.mxu0 0.0
        %557 = vmatprep.subr.mxu0 0.0
        %558 = vmatpush1.msra.mxu0 0.0
        %559 = vmatprep.subr.mxu0 0.0
        %560 = vmatpush1.msra.mxu0 %v525
        %561 = vmatprep.subr.mxu0 0.0
        %562 = vmatpush2.msra.mxu0 0.0
        %563 = vmatprep.subr.mxu0 0.0
        %564 = vmatpush2.msra.mxu0 0.0
        %565 = vmatprep.subr.mxu0 0.0
        %566 = vmatpush2.msra.mxu0 0.0
        %567 = vmatprep.subr.mxu0 0.0
        %568 = vmatpush2.msra.mxu0 0.0
        %569 = vmatprep.subr.mxu0 0.0
        %570 = vmatpush2.msra.mxu0 0.0
        %571 = vmatprep.subr.mxu0 0.0
        %572 = vmatpush2.msra.mxu0 0.0
        %573 = vmatprep.subr.mxu0 0.0
        %574 = vmatpush2.msra.mxu0 0.0
        %575 = vmatprep.subr.mxu0 0.0
        %576 = vmatpush2.msra.mxu0 0.0
        %577 = vmatprep.subr.mxu0 0.0
        %578 = vmatpush2.msra.mxu0 0.0
        %579 = vmatprep.subr.mxu0 0.0
        %580 = vmatpush2.msra.mxu0 0.0
        %581 = vmatprep.subr.mxu0 0.0
        %582 = vmatpush2.msra.mxu0 0.0
        %583 = vmatprep.subr.mxu0 0.0
        %584 = vmatpush2.msra.mxu0 0.0
        %585 = vmatprep.subr.mxu0 0.0
        %586 = vmatpush2.msra.mxu0 0.0
        %587 = vmatprep.subr.mxu0 0.0
        %588 = vmatpush2.msra.mxu0 0.0
        %589 = vmatprep.subr.mxu0 0.0
        %590 = vmatpush2.msra.mxu0 0.0
        %591 = vmatprep.subr.mxu0 0.0
        %592 = vmatpush2.msra.mxu0 0.0
        %593 = vmatprep.mubr.f32.mxu0 0.0
        %594 = vmatmul.mubr.f32.gmra.mxu0 %v527
        %v595 = vpop.f32.mrf.mxu0
        %v596 = vadd.f32 0.0, %v595
        %v597 = vpop.f32.mrf.mxu0
        %598 = vdwg.mxu0
        %600 = vset.pattern.permute.xlu0 0
        %601 = vperm.xlu0 %600, %v524
        %v602 = vpop.permute.xlu0 %601
        %v604 = vadd.f32 %v602, %v596
        %606 = vrot.lane.b32.xlu0 %v525, 127
        %v607 = vpop.permute.xlu0 %606
        %v610 = vsel %vm363, %v523, 0
        %612 = vmatprep.subr.mxu0 0.0
        %613 = vmatpush1.msra.mxu0 0.0
        %614 = vmatprep.subr.mxu0 0.0
        %615 = vmatpush1.msra.mxu0 0.0
        %616 = vmatprep.subr.mxu0 0.0
        %617 = vmatpush1.msra.mxu0 0.0
        %618 = vmatprep.subr.mxu0 0.0
        %619 = vmatpush1.msra.mxu0 0.0
        %620 = vmatprep.subr.mxu0 0.0
        %621 = vmatpush1.msra.mxu0 0.0
        %622 = vmatprep.subr.mxu0 0.0
        %623 = vmatpush1.msra.mxu0 0.0
        %624 = vmatprep.subr.mxu0 0.0
        %625 = vmatpush1.msra.mxu0 0.0
        %626 = vmatprep.subr.mxu0 0.0
        %627 = vmatpush1.msra.mxu0 0.0
        %628 = vmatprep.subr.mxu0 0.0
        %629 = vmatpush1.msra.mxu0 0.0
        %630 = vmatprep.subr.mxu0 0.0
        %631 = vmatpush1.msra.mxu0 0.0
        %632 = vmatprep.subr.mxu0 0.0
        %633 = vmatpush1.msra.mxu0 0.0
        %634 = vmatprep.subr.mxu0 0.0
        %635 = vmatpush1.msra.mxu0 0.0
        %636 = vmatprep.subr.mxu0 0.0
        %637 = vmatpush1.msra.mxu0 0.0
        %638 = vmatprep.subr.mxu0 0.0
        %639 = vmatpush1.msra.mxu0 0.0
        %640 = vmatprep.subr.mxu0 0.0
        %641 = vmatpush1.msra.mxu0 0.0
        %642 = vmatprep.subr.mxu0 0.0
        %643 = vmatpush1.msra.mxu0 %v607
        %644 = vmatprep.subr.mxu0 0.0
        %645 = vmatpush2.msra.mxu0 0.0
        %646 = vmatprep.subr.mxu0 0.0
        %647 = vmatpush2.msra.mxu0 0.0
        %648 = vmatprep.subr.mxu0 0.0
        %649 = vmatpush2.msra.mxu0 0.0
        %650 = vmatprep.subr.mxu0 0.0
        %651 = vmatpush2.msra.mxu0 0.0
        %652 = vmatprep.subr.mxu0 0.0
        %653 = vmatpush2.msra.mxu0 0.0
        %654 = vmatprep.subr.mxu0 0.0
        %655 = vmatpush2.msra.mxu0 0.0
        %656 = vmatprep.subr.mxu0 0.0
        %657 = vmatpush2.msra.mxu0 0.0
        %658 = vmatprep.subr.mxu0 0.0
        %659 = vmatpush2.msra.mxu0 0.0
        %660 = vmatprep.subr.mxu0 0.0
        %661 = vmatpush2.msra.mxu0 0.0
        %662 = vmatprep.subr.mxu0 0.0
        %663 = vmatpush2.msra.mxu0 0.0
        %664 = vmatprep.subr.mxu0 0.0
        %665 = vmatpush2.msra.mxu0 0.0
        %666 = vmatprep.subr.mxu0 0.0
        %667 = vmatpush2.msra.mxu0 0.0
        %668 = vmatprep.subr.mxu0 0.0
        %669 = vmatpush2.msra.mxu0 0.0
        %670 = vmatprep.subr.mxu0 0.0
        %671 = vmatpush2.msra.mxu0 0.0
        %672 = vmatprep.subr.mxu0 0.0
        %673 = vmatpush2.msra.mxu0 0.0
        %674 = vmatprep.subr.mxu0 0.0
        %675 = vmatpush2.msra.mxu0 0.0
        %676 = vmatprep.mubr.f32.mxu0 0.0
        %677 = vmatmul.mubr.f32.gmra.mxu0 %v610
        %v678 = vpop.f32.mrf.mxu0
        %v679 = vadd.f32 0.0, %v678
        %v680 = vpop.f32.mrf.mxu0
        %681 = vdwg.mxu0
        %v682 = vadd.f32 %v604, %v679
        %v683 = vmax.f32 %v682, 0.0
        %v684 = vld [vmem:[#allocation5] sm:$0xff]
        %v685 = vld [vmem:[%s6] sm:$0xff]
        %687 = vset.pattern.permute.xlu0 0
        %688 = vperm.xlu0 %687, %v685
        %v689 = vpop.permute.xlu0 %688
        %v692 = vsel %vm363, %v684, 0
        %694 = vmatprep.subr.mxu0 0.0
        %695 = vmatpush1.msra.mxu0 0.0
        %696 = vmatprep.subr.mxu0 0.0
        %697 = vmatpush1.msra.mxu0 0.0
        %698 = vmatprep.subr.mxu0 0.0
        %699 = vmatpush1.msra.mxu0 0.0
        %700 = vmatprep.subr.mxu0 0.0
        %701 = vmatpush1.msra.mxu0 0.0
        %702 = vmatprep.subr.mxu0 0.0
        %703 = vmatpush1.msra.mxu0 0.0
        %704 = vmatprep.subr.mxu0 0.0
        %705 = vmatpush1.msra.mxu0 0.0
        %706 = vmatprep.subr.mxu0 0.0
        %707 = vmatpush1.msra.mxu0 0.0
        %708 = vmatprep.subr.mxu0 0.0
        %709 = vmatpush1.msra.mxu0 0.0
        %710 = vmatprep.subr.mxu0 0.0
        %711 = vmatpush1.msra.mxu0 0.0
        %712 = vmatprep.subr.mxu0 0.0
        %713 = vmatpush1.msra.mxu0 0.0
        %714 = vmatprep.subr.mxu0 0.0
        %715 = vmatpush1.msra.mxu0 0.0
        %716 = vmatprep.subr.mxu0 0.0
        %717 = vmatpush1.msra.mxu0 0.0
        %718 = vmatprep.subr.mxu0 0.0
        %719 = vmatpush1.msra.mxu0 0.0
        %720 = vmatprep.subr.mxu0 0.0
        %721 = vmatpush1.msra.mxu0 0.0
        %722 = vmatprep.subr.mxu0 0.0
        %723 = vmatpush1.msra.mxu0 0.0
        %724 = vmatprep.subr.mxu0 0.0
        %725 = vmatpush1.msra.mxu0 %v683
        %726 = vmatprep.subr.mxu0 0.0
        %727 = vmatpush2.msra.mxu0 0.0
        %728 = vmatprep.subr.mxu0 0.0
        %729 = vmatpush2.msra.mxu0 0.0
        %730 = vmatprep.subr.mxu0 0.0
        %731 = vmatpush2.msra.mxu0 0.0
        %732 = vmatprep.subr.mxu0 0.0
        %733 = vmatpush2.msra.mxu0 0.0
        %734 = vmatprep.subr.mxu0 0.0
        %735 = vmatpush2.msra.mxu0 0.0
        %736 = vmatprep.subr.mxu0 0.0
        %737 = vmatpush2.msra.mxu0 0.0
        %738 = vmatprep.subr.mxu0 0.0
        %739 = vmatpush2.msra.mxu0 0.0
        %740 = vmatprep.subr.mxu0 0.0
        %741 = vmatpush2.msra.mxu0 0.0
        %742 = vmatprep.subr.mxu0 0.0
        %743 = vmatpush2.msra.mxu0 0.0
        %744 = vmatprep.subr.mxu0 0.0
        %745 = vmatpush2.msra.mxu0 0.0
        %746 = vmatprep.subr.mxu0 0.0
        %747 = vmatpush2.msra.mxu0 0.0
        %748 = vmatprep.subr.mxu0 0.0
        %749 = vmatpush2.msra.mxu0 0.0
        %750 = vmatprep.subr.mxu0 0.0
        %751 = vmatpush2.msra.mxu0 0.0
        %752 = vmatprep.subr.mxu0 0.0
        %753 = vmatpush2.msra.mxu0 0.0
        %754 = vmatprep.subr.mxu0 0.0
        %755 = vmatpush2.msra.mxu0 0.0
        %756 = vmatprep.subr.mxu0 0.0
        %757 = vmatpush2.msra.mxu0 0.0
        %758 = vmatprep.mubr.f32.mxu0 0.0
        %759 = vmatmul.mubr.f32.gmra.mxu0 %v692
        %v760 = vpop.f32.mrf.mxu0
        %v761 = vadd.f32 %v689, %v760
        %v762 = vpop.f32.mrf.mxu0
        %763 = vdwg.mxu0
        %765 = vrot.lane.b32.xlu0 %v520, 127
        %v766 = vpop.permute.xlu0 %765
        %v768 = vadd.f32 %v761, %v766
        %s769 = scalar_lea.vmem %s3, 16
        %v770 = vld [vmem:[%s769] sm:$0xff]
        %s771 = scalar_lea.vmem %s3, 24
        %v772 = vld [vmem:[%s771] sm:$0xff]
        %s773 = scalar_lea.vmem %s4, 8
        %v774 = vld [vmem:[%s773] sm:$0xff]
        %v775 = vmax.f32 %v768, 0.0
        %v777 = vsel %vm363, %v770, 0
        %779 = vmatprep.subr.mxu0 0.0
        %780 = vmatpush1.msra.mxu0 0.0
        %781 = vmatprep.subr.mxu0 0.0
        %782 = vmatpush1.msra.mxu0 0.0
        %783 = vmatprep.subr.mxu0 0.0
        %784 = vmatpush1.msra.mxu0 0.0
        %785 = vmatprep.subr.mxu0 0.0
        %786 = vmatpush1.msra.mxu0 0.0
        %787 = vmatprep.subr.mxu0 0.0
        %788 = vmatpush1.msra.mxu0 0.0
        %789 = vmatprep.subr.mxu0 0.0
        %790 = vmatpush1.msra.mxu0 0.0
        %791 = vmatprep.subr.mxu0 0.0
        %792 = vmatpush1.msra.mxu0 0.0
        %793 = vmatprep.subr.mxu0 0.0
        %794 = vmatpush1.msra.mxu0 0.0
        %795 = vmatprep.subr.mxu0 0.0
        %796 = vmatpush1.msra.mxu0 0.0
        %797 = vmatprep.subr.mxu0 0.0
        %798 = vmatpush1.msra.mxu0 0.0
        %799 = vmatprep.subr.mxu0 0.0
        %800 = vmatpush1.msra.mxu0 0.0
        %801 = vmatprep.subr.mxu0 0.0
        %802 = vmatpush1.msra.mxu0 0.0
        %803 = vmatprep.subr.mxu0 0.0
        %804 = vmatpush1.msra.mxu0 0.0
        %805 = vmatprep.subr.mxu0 0.0
        %806 = vmatpush1.msra.mxu0 0.0
        %807 = vmatprep.subr.mxu0 0.0
        %808 = vmatpush1.msra.mxu0 0.0
        %809 = vmatprep.subr.mxu0 0.0
        %810 = vmatpush1.msra.mxu0 %v775
        %811 = vmatprep.subr.mxu0 0.0
        %812 = vmatpush2.msra.mxu0 0.0
        %813 = vmatprep.subr.mxu0 0.0
        %814 = vmatpush2.msra.mxu0 0.0
        %815 = vmatprep.subr.mxu0 0.0
        %816 = vmatpush2.msra.mxu0 0.0
        %817 = vmatprep.subr.mxu0 0.0
        %818 = vmatpush2.msra.mxu0 0.0
        %819 = vmatprep.subr.mxu0 0.0
        %820 = vmatpush2.msra.mxu0 0.0
        %821 = vmatprep.subr.mxu0 0.0
        %822 = vmatpush2.msra.mxu0 0.0
        %823 = vmatprep.subr.mxu0 0.0
        %824 = vmatpush2.msra.mxu0 0.0
        %825 = vmatprep.subr.mxu0 0.0
        %826 = vmatpush2.msra.mxu0 0.0
        %827 = vmatprep.subr.mxu0 0.0
        %828 = vmatpush2.msra.mxu0 0.0
        %829 = vmatprep.subr.mxu0 0.0
        %830 = vmatpush2.msra.mxu0 0.0
        %831 = vmatprep.subr.mxu0 0.0
        %832 = vmatpush2.msra.mxu0 0.0
        %833 = vmatprep.subr.mxu0 0.0
        %834 = vmatpush2.msra.mxu0 0.0
        %835 = vmatprep.subr.mxu0 0.0
        %836 = vmatpush2.msra.mxu0 0.0
        %837 = vmatprep.subr.mxu0 0.0
        %838 = vmatpush2.msra.mxu0 0.0
        %839 = vmatprep.subr.mxu0 0.0
        %840 = vmatpush2.msra.mxu0 0.0
        %841 = vmatprep.subr.mxu0 0.0
        %842 = vmatpush2.msra.mxu0 0.0
        %843 = vmatprep.mubr.f32.mxu0 0.0
        %844 = vmatmul.mubr.f32.gmra.mxu0 %v777
        %v845 = vpop.f32.mrf.mxu0
        %v846 = vadd.f32 0.0, %v845
        %v847 = vpop.f32.mrf.mxu0
        %848 = vdwg.mxu0
        %850 = vset.pattern.permute.xlu0 0
        %851 = vperm.xlu0 %850, %v774
        %v852 = vpop.permute.xlu0 %851
        %v854 = vadd.f32 %v852, %v846
        %856 = vrot.lane.b32.xlu0 %v775, 126
        %v857 = vpop.permute.xlu0 %856
        %v860 = vsel %vm363, %v772, 0
        %862 = vmatprep.subr.mxu0 0.0
        %863 = vmatpush1.msra.mxu0 0.0
        %864 = vmatprep.subr.mxu0 0.0
        %865 = vmatpush1.msra.mxu0 0.0
        %866 = vmatprep.subr.mxu0 0.0
        %867 = vmatpush1.msra.mxu0 0.0
        %868 = vmatprep.subr.mxu0 0.0
        %869 = vmatpush1.msra.mxu0 0.0
        %870 = vmatprep.subr.mxu0 0.0
        %871 = vmatpush1.msra.mxu0 0.0
        %872 = vmatprep.subr.mxu0 0.0
        %873 = vmatpush1.msra.mxu0 0.0
        %874 = vmatprep.subr.mxu0 0.0
        %875 = vmatpush1.msra.mxu0 0.0
        %876 = vmatprep.subr.mxu0 0.0
        %877 = vmatpush1.msra.mxu0 0.0
        %878 = vmatprep.subr.mxu0 0.0
        %879 = vmatpush1.msra.mxu0 0.0
        %880 = vmatprep.subr.mxu0 0.0
        %881 = vmatpush1.msra.mxu0 0.0
        %882 = vmatprep.subr.mxu0 0.0
        %883 = vmatpush1.msra.mxu0 0.0
        %884 = vmatprep.subr.mxu0 0.0
        %885 = vmatpush1.msra.mxu0 0.0
        %886 = vmatprep.subr.mxu0 0.0
        %887 = vmatpush1.msra.mxu0 0.0
        %888 = vmatprep.subr.mxu0 0.0
        %889 = vmatpush1.msra.mxu0 0.0
        %890 = vmatprep.subr.mxu0 0.0
        %891 = vmatpush1.msra.mxu0 0.0
        %892 = vmatprep.subr.mxu0 0.0
        %893 = vmatpush1.msra.mxu0 %v857
        %894 = vmatprep.subr.mxu0 0.0
        %895 = vmatpush2.msra.mxu0 0.0
        %896 = vmatprep.subr.mxu0 0.0
        %897 = vmatpush2.msra.mxu0 0.0
        %898 = vmatprep.subr.mxu0 0.0
        %899 = vmatpush2.msra.mxu0 0.0
        %900 = vmatprep.subr.mxu0 0.0
        %901 = vmatpush2.msra.mxu0 0.0
        %902 = vmatprep.subr.mxu0 0.0
        %903 = vmatpush2.msra.mxu0 0.0
        %904 = vmatprep.subr.mxu0 0.0
        %905 = vmatpush2.msra.mxu0 0.0
        %906 = vmatprep.subr.mxu0 0.0
        %907 = vmatpush2.msra.mxu0 0.0
        %908 = vmatprep.subr.mxu0 0.0
        %909 = vmatpush2.msra.mxu0 0.0
        %910 = vmatprep.subr.mxu0 0.0
        %911 = vmatpush2.msra.mxu0 0.0
        %912 = vmatprep.subr.mxu0 0.0
        %913 = vmatpush2.msra.mxu0 0.0
        %914 = vmatprep.subr.mxu0 0.0
        %915 = vmatpush2.msra.mxu0 0.0
        %916 = vmatprep.subr.mxu0 0.0
        %917 = vmatpush2.msra.mxu0 0.0
        %918 = vmatprep.subr.mxu0 0.0
        %919 = vmatpush2.msra.mxu0 0.0
        %920 = vmatprep.subr.mxu0 0.0
        %921 = vmatpush2.msra.mxu0 0.0
        %922 = vmatprep.subr.mxu0 0.0
        %923 = vmatpush2.msra.mxu0 0.0
        %924 = vmatprep.subr.mxu0 0.0
        %925 = vmatpush2.msra.mxu0 0.0
        %926 = vmatprep.mubr.f32.mxu0 0.0
        %927 = vmatmul.mubr.f32.gmra.mxu0 %v860
        %v928 = vpop.f32.mrf.mxu0
        %v929 = vadd.f32 0.0, %v928
        %v930 = vpop.f32.mrf.mxu0
        %931 = vdwg.mxu0
        %v932 = vadd.f32 %v854, %v929
        %v933 = vmax.f32 %v932, 0.0
        %s934 = scalar_lea.vmem [#allocation5], 8
        %v935 = vld [vmem:[%s934] sm:$0xff]
        %s936 = scalar_lea.vmem %s6, 8
        %v937 = vld [vmem:[%s936] sm:$0xff]
        %939 = vset.pattern.permute.xlu0 0
        %940 = vperm.xlu0 %939, %v937
        %v941 = vpop.permute.xlu0 %940
        %v944 = vsel %vm363, %v935, 0
        %946 = vmatprep.subr.mxu0 0.0
        %947 = vmatpush1.msra.mxu0 0.0
        %948 = vmatprep.subr.mxu0 0.0
        %949 = vmatpush1.msra.mxu0 0.0
        %950 = vmatprep.subr.mxu0 0.0
        %951 = vmatpush1.msra.mxu0 0.0
        %952 = vmatprep.subr.mxu0 0.0
        %953 = vmatpush1.msra.mxu0 0.0
        %954 = vmatprep.subr.mxu0 0.0
        %955 = vmatpush1.msra.mxu0 0.0
        %956 = vmatprep.subr.mxu0 0.0
        %957 = vmatpush1.msra.mxu0 0.0
        %958 = vmatprep.subr.mxu0 0.0
        %959 = vmatpush1.msra.mxu0 0.0
        %960 = vmatprep.subr.mxu0 0.0
        %961 = vmatpush1.msra.mxu0 0.0
        %962 = vmatprep.subr.mxu0 0.0
        %963 = vmatpush1.msra.mxu0 0.0
        %964 = vmatprep.subr.mxu0 0.0
        %965 = vmatpush1.msra.mxu0 0.0
        %966 = vmatprep.subr.mxu0 0.0
        %967 = vmatpush1.msra.mxu0 0.0
        %968 = vmatprep.subr.mxu0 0.0
        %969 = vmatpush1.msra.mxu0 0.0
        %970 = vmatprep.subr.mxu0 0.0
        %971 = vmatpush1.msra.mxu0 0.0
        %972 = vmatprep.subr.mxu0 0.0
        %973 = vmatpush1.msra.mxu0 0.0
        %974 = vmatprep.subr.mxu0 0.0
        %975 = vmatpush1.msra.mxu0 0.0
        %976 = vmatprep.subr.mxu0 0.0
        %977 = vmatpush1.msra.mxu0 %v933
        %978 = vmatprep.subr.mxu0 0.0
        %979 = vmatpush2.msra.mxu0 0.0
        %980 = vmatprep.subr.mxu0 0.0
        %981 = vmatpush2.msra.mxu0 0.0
        %982 = vmatprep.subr.mxu0 0.0
        %983 = vmatpush2.msra.mxu0 0.0
        %984 = vmatprep.subr.mxu0 0.0
        %985 = vmatpush2.msra.mxu0 0.0
        %986 = vmatprep.subr.mxu0 0.0
        %987 = vmatpush2.msra.mxu0 0.0
        %988 = vmatprep.subr.mxu0 0.0
        %989 = vmatpush2.msra.mxu0 0.0
        %990 = vmatprep.subr.mxu0 0.0
        %991 = vmatpush2.msra.mxu0 0.0
        %992 = vmatprep.subr.mxu0 0.0
        %993 = vmatpush2.msra.mxu0 0.0
        %994 = vmatprep.subr.mxu0 0.0
        %995 = vmatpush2.msra.mxu0 0.0
        %996 = vmatprep.subr.mxu0 0.0
        %997 = vmatpush2.msra.mxu0 0.0
        %998 = vmatprep.subr.mxu0 0.0
        %999 = vmatpush2.msra.mxu0 0.0
        %1000 = vmatprep.subr.mxu0 0.0
        %1001 = vmatpush2.msra.mxu0 0.0
        %1002 = vmatprep.subr.mxu0 0.0
        %1003 = vmatpush2.msra.mxu0 0.0
        %1004 = vmatprep.subr.mxu0 0.0
        %1005 = vmatpush2.msra.mxu0 0.0
        %1006 = vmatprep.subr.mxu0 0.0
        %1007 = vmatpush2.msra.mxu0 0.0
        %1008 = vmatprep.subr.mxu0 0.0
        %1009 = vmatpush2.msra.mxu0 0.0
        %1010 = vmatprep.mubr.f32.mxu0 0.0
        %1011 = vmatmul.mubr.f32.gmra.mxu0 %v944
        %v1012 = vpop.f32.mrf.mxu0
        %v1013 = vadd.f32 %v941, %v1012
        %v1014 = vpop.f32.mrf.mxu0
        %1015 = vdwg.mxu0
        %1017 = vrot.lane.b32.xlu0 %v768, 126
        %v1018 = vpop.permute.xlu0 %1017
        %v1020 = vadd.f32 %v1013, %v1018
        %v1021 = vld [vmem:[%s7] sm:$0xff]
        %v1022 = vld [vmem:[%s8] sm:$0xff]
        %1024 = vset.pattern.permute.xlu0 0
        %1025 = vperm.xlu0 %1024, %v1022
        %v1026 = vpop.permute.xlu0 %1025
        %v1029 = vsel %vm363, %v1021, 0
        %1031 = vmatprep.subr.mxu0 0.0
        %1032 = vmatpush1.msra.mxu0 0.0
        %1033 = vmatprep.subr.mxu0 0.0
        %1034 = vmatpush1.msra.mxu0 0.0
        %1035 = vmatprep.subr.mxu0 0.0
        %1036 = vmatpush1.msra.mxu0 0.0
        %1037 = vmatprep.subr.mxu0 0.0
        %1038 = vmatpush1.msra.mxu0 0.0
        %1039 = vmatprep.subr.mxu0 0.0
        %1040 = vmatpush1.msra.mxu0 0.0
        %1041 = vmatprep.subr.mxu0 0.0
        %1042 = vmatpush1.msra.mxu0 0.0
        %1043 = vmatprep.subr.mxu0 0.0
        %1044 = vmatpush1.msra.mxu0 0.0
        %1045 = vmatprep.subr.mxu0 0.0
        %1046 = vmatpush1.msra.mxu0 0.0
        %1047 = vmatprep.subr.mxu0 0.0
        %1048 = vmatpush1.msra.mxu0 0.0
        %1049 = vmatprep.subr.mxu0 0.0
        %1050 = vmatpush1.msra.mxu0 0.0
        %1051 = vmatprep.subr.mxu0 0.0
        %1052 = vmatpush1.msra.mxu0 0.0
        %1053 = vmatprep.subr.mxu0 0.0
        %1054 = vmatpush1.msra.mxu0 0.0
        %1055 = vmatprep.subr.mxu0 0.0
        %1056 = vmatpush1.msra.mxu0 0.0
        %1057 = vmatprep.subr.mxu0 0.0
        %1058 = vmatpush1.msra.mxu0 0.0
        %1059 = vmatprep.subr.mxu0 0.0
        %1060 = vmatpush1.msra.mxu0 0.0
        %1061 = vmatprep.subr.mxu0 0.0
        %1062 = vmatpush1.msra.mxu0 %v1020
        %1063 = vmatprep.subr.mxu0 0.0
        %1064 = vmatpush2.msra.mxu0 0.0
        %1065 = vmatprep.subr.mxu0 0.0
        %1066 = vmatpush2.msra.mxu0 0.0
        %1067 = vmatprep.subr.mxu0 0.0
        %1068 = vmatpush2.msra.mxu0 0.0
        %1069 = vmatprep.subr.mxu0 0.0
        %1070 = vmatpush2.msra.mxu0 0.0
        %1071 = vmatprep.subr.mxu0 0.0
        %1072 = vmatpush2.msra.mxu0 0.0
        %1073 = vmatprep.subr.mxu0 0.0
        %1074 = vmatpush2.msra.mxu0 0.0
        %1075 = vmatprep.subr.mxu0 0.0
        %1076 = vmatpush2.msra.mxu0 0.0
        %1077 = vmatprep.subr.mxu0 0.0
        %1078 = vmatpush2.msra.mxu0 0.0
        %1079 = vmatprep.subr.mxu0 0.0
        %1080 = vmatpush2.msra.mxu0 0.0
        %1081 = vmatprep.subr.mxu0 0.0
        %1082 = vmatpush2.msra.mxu0 0.0
        %1083 = vmatprep.subr.mxu0 0.0
        %1084 = vmatpush2.msra.mxu0 0.0
        %1085 = vmatprep.subr.mxu0 0.0
        %1086 = vmatpush2.msra.mxu0 0.0
        %1087 = vmatprep.subr.mxu0 0.0
        %1088 = vmatpush2.msra.mxu0 0.0
        %1089 = vmatprep.subr.mxu0 0.0
        %1090 = vmatpush2.msra.mxu0 0.0
        %1091 = vmatprep.subr.mxu0 0.0
        %1092 = vmatpush2.msra.mxu0 0.0
        %1093 = vmatprep.subr.mxu0 0.0
        %1094 = vmatpush2.msra.mxu0 0.0
        %1095 = vmatprep.mubr.f32.mxu0 0.0
        %1096 = vmatmul.mubr.f32.gmra.mxu0 %v1029
        %v1097 = vpop.f32.mrf.mxu0
        %v1098 = vadd.f32 %v1026, %v1097
        %v1099 = vpop.f32.mrf.mxu0
        %1100 = vdwg.mxu0
        %1102 = vrot.lane.b32.xlu0 %v1098, 126
        %v1103 = vpop.permute.xlu0 %1102
        %1105 = vrot.lane.b32.xlu0 %v1098, 124
        %v1106 = vpop.permute.xlu0 %1105
        %1108 = vrot.lane.b32.xlu0 %v1098, 122
        %v1109 = vpop.permute.xlu0 %1108
        %1111 = vrot.lane.b32.xlu0 %v1098, 120
        %v1112 = vpop.permute.xlu0 %1111
        %1114 = vrot.lane.b32.xlu0 %v1098, 118
        %v1115 = vpop.permute.xlu0 %1114
        %1117 = vrot.lane.b32.xlu0 %v1098, 116
        %v1118 = vpop.permute.xlu0 %1117
        %1120 = vrot.lane.b32.xlu0 %v1098, 114
        %v1121 = vpop.permute.xlu0 %1120
        %1123 = vrot.lane.b32.xlu0 %v1098, 112
        %v1124 = vpop.permute.xlu0 %1123
        %1126 = vrot.lane.b32.xlu0 %v1098, 110
        %v1127 = vpop.permute.xlu0 %1126
        %1129 = vrot.lane.b32.xlu0 %v1098, 108
        %v1130 = vpop.permute.xlu0 %1129
        %1132 = vrot.lane.b32.xlu0 %v1098, 106
        %v1133 = vpop.permute.xlu0 %1132
        %1135 = vrot.lane.b32.xlu0 %v1098, 104
        %v1136 = vpop.permute.xlu0 %1135
        %1138 = vrot.lane.b32.xlu0 %v1098, 102
        %v1139 = vpop.permute.xlu0 %1138
        %v1141 = vcombine.low %v1098, %v1106
        %v1142 = vcombine.high %v1098, %v1106
        %v1144 = vunpack.c.l.s4 1983009808
        %v1145 = vunpack.c.0.s8 %v1144
        %v1146 = vlaneseq
        %v1147 = vshrl.u32 %v1146, 7
        %v1148 = vsub.s32 %v1145, %v1147
        %v1149 = vrot.slane %v1141, %v1148
        %v1151 = vunpack.c.l.s4 1983009808
        %v1152 = vunpack.c.0.s8 %v1151
        %v1153 = vlaneseq
        %v1154 = vshrl.u32 %v1153, 7
        %v1155 = vsub.s32 %v1152, %v1154
        %v1156 = vrot.slane %v1142, %v1155
        %v1157 = vcombine.low %v1103, %v1109
        %v1158 = vcombine.high %v1103, %v1109
        %v1160 = vunpack.c.l.s4 1983009808
        %v1161 = vunpack.c.0.s8 %v1160
        %v1162 = vlaneseq
        %v1163 = vshrl.u32 %v1162, 7
        %v1164 = vsub.s32 %v1161, %v1163
        %v1165 = vrot.slane %v1157, %v1164
        %v1167 = vunpack.c.l.s4 1983009808
        %v1168 = vunpack.c.0.s8 %v1167
        %v1169 = vlaneseq
        %v1170 = vshrl.u32 %v1169, 7
        %v1171 = vsub.s32 %v1168, %v1170
        %v1172 = vrot.slane %v1158, %v1171
        %v1173 = vcombine.low %v1112, %v1118
        %v1174 = vcombine.high %v1112, %v1118
        %v1176 = vunpack.c.l.s4 1983009808
        %v1177 = vunpack.c.0.s8 %v1176
        %v1178 = vlaneseq
        %v1179 = vshrl.u32 %v1178, 7
        %v1180 = vsub.s32 %v1177, %v1179
        %v1181 = vrot.slane %v1173, %v1180
        %v1183 = vunpack.c.l.s4 1983009808
        %v1184 = vunpack.c.0.s8 %v1183
        %v1185 = vlaneseq
        %v1186 = vshrl.u32 %v1185, 7
        %v1187 = vsub.s32 %v1184, %v1186
        %v1188 = vrot.slane %v1174, %v1187
        %v1189 = vcombine.low %v1115, %v1121
        %v1190 = vcombine.high %v1115, %v1121
        %v1192 = vunpack.c.l.s4 1983009808
        %v1193 = vunpack.c.0.s8 %v1192
        %v1194 = vlaneseq
        %v1195 = vshrl.u32 %v1194, 7
        %v1196 = vsub.s32 %v1193, %v1195
        %v1197 = vrot.slane %v1189, %v1196
        %v1199 = vunpack.c.l.s4 1983009808
        %v1200 = vunpack.c.0.s8 %v1199
        %v1201 = vlaneseq
        %v1202 = vshrl.u32 %v1201, 7
        %v1203 = vsub.s32 %v1200, %v1202
        %v1204 = vrot.slane %v1190, %v1203
        %v1205 = vcombine.low %v1149, %v1165
        %v1206 = vcombine.high %v1149, %v1165
        %v1208 = vunpack.c.l.s4 1934713408
        %v1209 = vunpack.c.0.s8 %v1208
        %v1210 = vlaneseq
        %v1211 = vshrl.u32 %v1210, 7
        %v1212 = vsub.s32 %v1209, %v1211
        %v1213 = vrot.slane %v1205, %v1212
        %v1215 = vunpack.c.l.s4 1934713408
        %v1216 = vunpack.c.0.s8 %v1215
        %v1217 = vlaneseq
        %v1218 = vshrl.u32 %v1217, 7
        %v1219 = vsub.s32 %v1216, %v1218
        %v1220 = vrot.slane %v1206, %v1219
        %v1221 = vcombine.low %v1156, %v1172
        %v1222 = vcombine.high %v1156, %v1172
        %v1224 = vunpack.c.l.s4 1934713408
        %v1225 = vunpack.c.0.s8 %v1224
        %v1226 = vlaneseq
        %v1227 = vshrl.u32 %v1226, 7
        %v1228 = vsub.s32 %v1225, %v1227
        %v1229 = vrot.slane %v1221, %v1228
        %v1231 = vunpack.c.l.s4 1934713408
        %v1232 = vunpack.c.0.s8 %v1231
        %v1233 = vlaneseq
        %v1234 = vshrl.u32 %v1233, 7
        %v1235 = vsub.s32 %v1232, %v1234
        %v1236 = vrot.slane %v1222, %v1235
        %v1237 = vcombine.low %v1181, %v1197
        %v1238 = vcombine.high %v1181, %v1197
        %v1240 = vunpack.c.l.s4 1934713408
        %v1241 = vunpack.c.0.s8 %v1240
        %v1242 = vlaneseq
        %v1243 = vshrl.u32 %v1242, 7
        %v1244 = vsub.s32 %v1241, %v1243
        %v1245 = vrot.slane %v1237, %v1244
        %v1247 = vunpack.c.l.s4 1934713408
        %v1248 = vunpack.c.0.s8 %v1247
        %v1249 = vlaneseq
        %v1250 = vshrl.u32 %v1249, 7
        %v1251 = vsub.s32 %v1248, %v1250
        %v1252 = vrot.slane %v1238, %v1251
        %v1253 = vcombine.low %v1188, %v1204
        %v1254 = vcombine.high %v1188, %v1204
        %v1256 = vunpack.c.l.s4 1934713408
        %v1257 = vunpack.c.0.s8 %v1256
        %v1258 = vlaneseq
        %v1259 = vshrl.u32 %v1258, 7
        %v1260 = vsub.s32 %v1257, %v1259
        %v1261 = vrot.slane %v1253, %v1260
        %v1263 = vunpack.c.l.s4 1934713408
        %v1264 = vunpack.c.0.s8 %v1263
        %v1265 = vlaneseq
        %v1266 = vshrl.u32 %v1265, 7
        %v1267 = vsub.s32 %v1264, %v1266
        %v1268 = vrot.slane %v1254, %v1267
        %v1269 = vcombine.low %v1213, %v1245
        %v1270 = vcombine.high %v1213, %v1245
        %v1271 = vcombine.low %v1220, %v1252
        %v1272 = vcombine.high %v1220, %v1252
        %v1273 = vcombine.low %v1229, %v1261
        %v1274 = vcombine.high %v1229, %v1261
        %v1275 = vcombine.low %v1236, %v1268
        %v1276 = vcombine.high %v1236, %v1268
        %v1277 = vcombine.low %v1124, %v1130
        %v1278 = vcombine.high %v1124, %v1130
        %v1280 = vunpack.c.l.s4 1983009808
        %v1281 = vunpack.c.0.s8 %v1280
        %v1282 = vlaneseq
        %v1283 = vshrl.u32 %v1282, 7
        %v1284 = vsub.s32 %v1281, %v1283
        %v1285 = vrot.slane %v1277, %v1284
        %v1287 = vunpack.c.l.s4 1983009808
        %v1288 = vunpack.c.0.s8 %v1287
        %v1289 = vlaneseq
        %v1290 = vshrl.u32 %v1289, 7
        %v1291 = vsub.s32 %v1288, %v1290
        %v1292 = vrot.slane %v1278, %v1291
        %v1293 = vcombine.low %v1127, %v1133
        %v1294 = vcombine.high %v1127, %v1133
        %v1296 = vunpack.c.l.s4 1983009808
        %v1297 = vunpack.c.0.s8 %v1296
        %v1298 = vlaneseq
        %v1299 = vshrl.u32 %v1298, 7
        %v1300 = vsub.s32 %v1297, %v1299
        %v1301 = vrot.slane %v1293, %v1300
        %v1303 = vunpack.c.l.s4 1983009808
        %v1304 = vunpack.c.0.s8 %v1303
        %v1305 = vlaneseq
        %v1306 = vshrl.u32 %v1305, 7
        %v1307 = vsub.s32 %v1304, %v1306
        %v1308 = vrot.slane %v1294, %v1307
        %v1309 = vcombine.high %v1136, 0.0
        %v1311 = vunpack.c.l.s4 1983009808
        %v1312 = vunpack.c.0.s8 %v1311
        %v1313 = vlaneseq
        %v1314 = vshrl.u32 %v1313, 7
        %v1315 = vsub.s32 %v1312, %v1314
        %v1316 = vrot.slane %v1136, %v1315
        %v1318 = vunpack.c.l.s4 1983009808
        %v1319 = vunpack.c.0.s8 %v1318
        %v1320 = vlaneseq
        %v1321 = vshrl.u32 %v1320, 7
        %v1322 = vsub.s32 %v1319, %v1321
        %v1323 = vrot.slane %v1309, %v1322
        %v1324 = vcombine.high %v1139, 0.0
        %v1326 = vunpack.c.l.s4 1983009808
        %v1327 = vunpack.c.0.s8 %v1326
        %v1328 = vlaneseq
        %v1329 = vshrl.u32 %v1328, 7
        %v1330 = vsub.s32 %v1327, %v1329
        %v1331 = vrot.slane %v1139, %v1330
        %v1333 = vunpack.c.l.s4 1983009808
        %v1334 = vunpack.c.0.s8 %v1333
        %v1335 = vlaneseq
        %v1336 = vshrl.u32 %v1335, 7
        %v1337 = vsub.s32 %v1334, %v1336
        %v1338 = vrot.slane %v1324, %v1337
        %v1339 = vcombine.low %v1285, %v1301
        %v1340 = vcombine.high %v1285, %v1301
        %v1342 = vunpack.c.l.s4 1934713408
        %v1343 = vunpack.c.0.s8 %v1342
        %v1344 = vlaneseq
        %v1345 = vshrl.u32 %v1344, 7
        %v1346 = vsub.s32 %v1343, %v1345
        %v1347 = vrot.slane %v1339, %v1346
        %v1349 = vunpack.c.l.s4 1934713408
        %v1350 = vunpack.c.0.s8 %v1349
        %v1351 = vlaneseq
        %v1352 = vshrl.u32 %v1351, 7
        %v1353 = vsub.s32 %v1350, %v1352
        %v1354 = vrot.slane %v1340, %v1353
        %v1355 = vcombine.low %v1292, %v1308
        %v1356 = vcombine.high %v1292, %v1308
        %v1358 = vunpack.c.l.s4 1934713408
        %v1359 = vunpack.c.0.s8 %v1358
        %v1360 = vlaneseq
        %v1361 = vshrl.u32 %v1360, 7
        %v1362 = vsub.s32 %v1359, %v1361
        %v1363 = vrot.slane %v1355, %v1362
        %v1365 = vunpack.c.l.s4 1934713408
        %v1366 = vunpack.c.0.s8 %v1365
        %v1367 = vlaneseq
        %v1368 = vshrl.u32 %v1367, 7
        %v1369 = vsub.s32 %v1366, %v1368
        %v1370 = vrot.slane %v1356, %v1369
        %v1371 = vcombine.low %v1316, %v1331
        %v1372 = vcombine.high %v1316, %v1331
        %v1374 = vunpack.c.l.s4 1934713408
        %v1375 = vunpack.c.0.s8 %v1374
        %v1376 = vlaneseq
        %v1377 = vshrl.u32 %v1376, 7
        %v1378 = vsub.s32 %v1375, %v1377
        %v1379 = vrot.slane %v1371, %v1378
        %v1381 = vunpack.c.l.s4 1934713408
        %v1382 = vunpack.c.0.s8 %v1381
        %v1383 = vlaneseq
        %v1384 = vshrl.u32 %v1383, 7
        %v1385 = vsub.s32 %v1382, %v1384
        %v1386 = vrot.slane %v1372, %v1385
        %v1387 = vcombine.low %v1323, %v1338
        %v1388 = vcombine.high %v1323, %v1338
        %v1390 = vunpack.c.l.s4 1934713408
        %v1391 = vunpack.c.0.s8 %v1390
        %v1392 = vlaneseq
        %v1393 = vshrl.u32 %v1392, 7
        %v1394 = vsub.s32 %v1391, %v1393
        %v1395 = vrot.slane %v1387, %v1394
        %v1397 = vunpack.c.l.s4 1934713408
        %v1398 = vunpack.c.0.s8 %v1397
        %v1399 = vlaneseq
        %v1400 = vshrl.u32 %v1399, 7
        %v1401 = vsub.s32 %v1398, %v1400
        %v1402 = vrot.slane %v1388, %v1401
        %v1403 = vcombine.low %v1347, %v1379
        %v1404 = vcombine.high %v1347, %v1379
        %v1405 = vcombine.low %v1354, %v1386
        %v1406 = vcombine.high %v1354, %v1386
        %v1407 = vcombine.low %v1363, %v1395
        %v1408 = vcombine.high %v1363, %v1395
        %v1409 = vcombine.low %v1370, %v1402
        %v1410 = vcombine.high %v1370, %v1402
        %vm1411 = vcmask 15360
        %v1412 = vsel %vm1411, %v1269, 0.0
        %1413 = vadd.xlane.f32.xlu0 %v1412
        %v1414 = vpop.xlane.xlu0 %1413
        %vm1415 = vcmask 13312
        %v1416 = vsel %vm1415, %v1403, 0.0
        %1417 = vadd.xlane.f32.xlu0 %v1416
        %v1418 = vpop.xlane.xlu0 %1417
        %v1419 = vsel %vm1411, %v1270, 0.0
        %1420 = vadd.xlane.f32.xlu0 %v1419
        %v1421 = vpop.xlane.xlu0 %1420
        %v1422 = vsel %vm1415, %v1404, 0.0
        %1423 = vadd.xlane.f32.xlu0 %v1422
        %v1424 = vpop.xlane.xlu0 %1423
        %v1425 = vsel %vm1411, %v1271, 0.0
        %1426 = vadd.xlane.f32.xlu0 %v1425
        %v1427 = vpop.xlane.xlu0 %1426
        %v1428 = vsel %vm1415, %v1405, 0.0
        %1429 = vadd.xlane.f32.xlu0 %v1428
        %v1430 = vpop.xlane.xlu0 %1429
        %v1431 = vsel %vm1411, %v1272, 0.0
        %1432 = vadd.xlane.f32.xlu0 %v1431
        %v1433 = vpop.xlane.xlu0 %1432
        %v1434 = vsel %vm1415, %v1406, 0.0
        %1435 = vadd.xlane.f32.xlu0 %v1434
        %v1436 = vpop.xlane.xlu0 %1435
        %v1437 = vsel %vm1411, %v1273, 0.0
        %1438 = vadd.xlane.f32.xlu0 %v1437
        %v1439 = vpop.xlane.xlu0 %1438
        %v1440 = vsel %vm1415, %v1407, 0.0
        %1441 = vadd.xlane.f32.xlu0 %v1440
        %v1442 = vpop.xlane.xlu0 %1441
        %v1443 = vsel %vm1411, %v1274, 0.0
        %1444 = vadd.xlane.f32.xlu0 %v1443
        %v1445 = vpop.xlane.xlu0 %1444
        %v1446 = vsel %vm1415, %v1408, 0.0
        %1447 = vadd.xlane.f32.xlu0 %v1446
        %v1448 = vpop.xlane.xlu0 %1447
        %v1449 = vsel %vm1411, %v1275, 0.0
        %1450 = vadd.xlane.f32.xlu0 %v1449
        %v1451 = vpop.xlane.xlu0 %1450
        %v1452 = vsel %vm1415, %v1409, 0.0
        %1453 = vadd.xlane.f32.xlu0 %v1452
        %v1454 = vpop.xlane.xlu0 %1453
        %v1455 = vsel %vm1411, %v1276, 0.0
        %1456 = vadd.xlane.f32.xlu0 %v1455
        %v1457 = vpop.xlane.xlu0 %1456
        %v1458 = vsel %vm1415, %v1410, 0.0
        %1459 = vadd.xlane.f32.xlu0 %v1458
        %v1460 = vpop.xlane.xlu0 %1459
        %v1461 = vrcp.pop 2.0
        %v1462 = vmul.f32 %v1414, %v1461
        %v1463 = vmul.f32 %v1418, %v1461
        %v1464 = vmul.f32 %v1421, %v1461
        %v1465 = vmul.f32 %v1424, %v1461
        %v1466 = vmul.f32 %v1427, %v1461
        %v1467 = vmul.f32 %v1430, %v1461
        %v1468 = vmul.f32 %v1433, %v1461
        %v1469 = vmul.f32 %v1436, %v1461
        %v1470 = vmul.f32 %v1439, %v1461
        %v1471 = vmul.f32 %v1442, %v1461
        %v1472 = vmul.f32 %v1445, %v1461
        %v1473 = vmul.f32 %v1448, %v1461
        %v1474 = vmul.f32 %v1451, %v1461
        %v1475 = vmul.f32 %v1454, %v1461
        %v1476 = vmul.f32 %v1457, %v1461
        %v1477 = vmul.f32 %v1460, %v1461
        %v1494 = vlaneseq
        %v1495 = vand.u32 %v1494, 127
        %v1496 = vlaneseq
        %v1497 = vshrl.u32 %v1496, 7
        %v1498 = vsub.s32 %v1495, %v1497
        %v1499 = vrot.slane %v1462, %v1498
        %v1500 = vadd.s32 %v1495, 4294967288
        %v1501 = vlaneseq
        %v1502 = vshrl.u32 %v1501, 7
        %v1503 = vsub.s32 %v1500, %v1502
        %v1504 = vrot.slane %v1463, %v1503
        %vm1505 = vcmask 130112
        %v1506 = vsel %vm1505, %v1504, %v1499
        %v1507 = vlaneseq
        %v1508 = vshrl.u32 %v1507, 7
        %v1509 = vsub.s32 %v1495, %v1508
        %v1510 = vrot.slane %v1464, %v1509
        %v1511 = vlaneseq
        %v1512 = vshrl.u32 %v1511, 7
        %v1513 = vsub.s32 %v1500, %v1512
        %v1514 = vrot.slane %v1465, %v1513
        %v1515 = vsel %vm1505, %v1514, %v1510
        %v1516 = vlaneseq
        %v1517 = vshrl.u32 %v1516, 7
        %v1518 = vsub.s32 %v1495, %v1517
        %v1519 = vrot.slane %v1466, %v1518
        %v1520 = vlaneseq
        %v1521 = vshrl.u32 %v1520, 7
        %v1522 = vsub.s32 %v1500, %v1521
        %v1523 = vrot.slane %v1467, %v1522
        %v1524 = vsel %vm1505, %v1523, %v1519
        %v1525 = vlaneseq
        %v1526 = vshrl.u32 %v1525, 7
        %v1527 = vsub.s32 %v1495, %v1526
        %v1528 = vrot.slane %v1468, %v1527
        %v1529 = vlaneseq
        %v1530 = vshrl.u32 %v1529, 7
        %v1531 = vsub.s32 %v1500, %v1530
        %v1532 = vrot.slane %v1469, %v1531
        %v1533 = vsel %vm1505, %v1532, %v1528
        %v1534 = vlaneseq
        %v1535 = vshrl.u32 %v1534, 7
        %v1536 = vsub.s32 %v1495, %v1535
        %v1537 = vrot.slane %v1470, %v1536
        %v1538 = vlaneseq
        %v1539 = vshrl.u32 %v1538, 7
        %v1540 = vsub.s32 %v1500, %v1539
        %v1541 = vrot.slane %v1471, %v1540
        %v1542 = vsel %vm1505, %v1541, %v1537
        %v1543 = vlaneseq
        %v1544 = vshrl.u32 %v1543, 7
        %v1545 = vsub.s32 %v1495, %v1544
        %v1546 = vrot.slane %v1472, %v1545
        %v1547 = vlaneseq
        %v1548 = vshrl.u32 %v1547, 7
        %v1549 = vsub.s32 %v1500, %v1548
        %v1550 = vrot.slane %v1473, %v1549
        %v1551 = vsel %vm1505, %v1550, %v1546
        %v1552 = vlaneseq
        %v1553 = vshrl.u32 %v1552, 7
        %v1554 = vsub.s32 %v1495, %v1553
        %v1555 = vrot.slane %v1474, %v1554
        %v1556 = vlaneseq
        %v1557 = vshrl.u32 %v1556, 7
        %v1558 = vsub.s32 %v1500, %v1557
        %v1559 = vrot.slane %v1475, %v1558
        %v1560 = vsel %vm1505, %v1559, %v1555
        %v1561 = vlaneseq
        %v1562 = vshrl.u32 %v1561, 7
        %v1563 = vsub.s32 %v1495, %v1562
        %v1564 = vrot.slane %v1476, %v1563
        %v1565 = vlaneseq
        %v1566 = vshrl.u32 %v1565, 7
        %v1567 = vsub.s32 %v1500, %v1566
        %v1568 = vrot.slane %v1477, %v1567
        %v1569 = vsel %vm1505, %v1568, %v1564
        %vm1570 = vcmask 1041409
        %v1571 = vsel %vm1570, %v1515, %v1506
        %vm1572 = vcmask 1042434
        %v1573 = vsel %vm1572, %v1524, %v1571
        %vm1574 = vcmask 1043459
        %v1575 = vsel %vm1574, %v1533, %v1573
        %vm1576 = vcmask 1044484
        %v1577 = vsel %vm1576, %v1542, %v1575
        %vm1578 = vcmask 1045509
        %v1579 = vsel %vm1578, %v1551, %v1577
        %vm1580 = vcmask 1046534
        %v1581 = vsel %vm1580, %v1560, %v1579
        %vm1582 = vcmask 1047559
        %v1583 = vsel %vm1582, %v1569, %v1581
        %vm1585 = vcmask 113664
        %v1586 = vsel %vm1585, %v1583, 0.0
        %1587 = vst [vmem:[%s353] sm:$0xff] %v1586
        %s1588 = sand.u32 %s227, 1
        %s1589 = scalar_lea.sflag [#allocation4], %s1588
        %s1590 = sand.u32 %s227, 1
        %s1591 = smul.addr %s1590, 8
        %s1592 = scalar_lea.vmem [#allocation7], %s1591
        // Predicated region
        $region65: #{tpu_custom_call.1} parent=55 // pred_check
          %p1593 = pneg %p237
        $region66: #{tpu_custom_call.1} parent=55 // pred_check_branch
          %1595 = sbr.rel (%p1593) target = $region68
        $region67: #{tpu_custom_call.1} parent=55 // pred_region
          %s1597 = ssub.s32 128, 128
          %1598 = vsyncadd %s1589, %s1597
          %s1599 = smul.addr %s25, 128
          %s1600 = scalar_lea.hbm %s9, %s1599
          %s1602 = sshll.u32 %s1592, 4
          %s1603 = int_to_ptr.vmem [resolvable:$true] %s1602
          %1605 = dma.vmem_to_hbm [thread:$0]  %s1603, 128, %s1600, %s1589
        $region68: #{tpu_custom_call.1} parent=55 // pred_fallthru
          _
      $region56: #{tpu_custom_call.1} parent=5 // pred_fallthru
        _
      %p1606 = scmp.le.s32.totalorder 2, %s20
      // Predicated region
      $region69: #{tpu_custom_call.1} parent=5 // pred_check
        %p1607 = pneg %p1606
      $region70: #{tpu_custom_call.1} parent=5 // pred_check_branch
        %1609 = sbr.rel (%p1607) target = $region72
      $region71: #{tpu_custom_call.1} parent=5 // pred_region
        %s1610 = ssub.s32 %s20, 2
        // Predicated region
        $region73: #{tpu_custom_call.1} parent=71 // pred_check
          %p1611 = pneg %p243
        $region74: #{tpu_custom_call.1} parent=71 // pred_check_branch
          %1613 = sbr.rel (%p1611) target = $region76
        $region75: #{tpu_custom_call.1} parent=71 // pred_region
          %s1614 = sand.u32 %s228, 1
          %s1615 = scalar_lea.sflag [#allocation4], %s1614
          %s1616 = sand.u32 %s228, 1
          %s1617 = smul.addr %s1616, 8
          %s1618 = scalar_lea.vmem [#allocation7], %s1617
          %1619 = dma.done %s1615, 128
        $region76: #{tpu_custom_call.1} parent=71 // pred_fallthru
          _
      $region72: #{tpu_custom_call.1} parent=5 // pred_fallthru
        _
    $region6: #{tpu_custom_call.1} parent=1 // loop_footer
      %s24 = sadd.s32 1, %s20
    $region7: #{tpu_custom_call.1} parent=1 // loop_footer_branch
      %19 = sbr.rel target = $region3
    $region8: #{tpu_custom_call.1} parent=1 // loop_exit
      _
    %1620 = vsyncpa [#allocation3], 1
    %s1621 = scalar_lea.sflag [#allocation3], 1
    %1622 = vsyncpa %s1621, 1
    %1623 = vsyncpa [#allocation6], 1
    %1624 = vsyncpa [#allocation4], 1
    %s1625 = scalar_lea.sflag [#allocation4], 1
    %1626 = vsyncpa %s1625, 1

</llo_original>
